<compile_context>
chip_gen: v6e
topology: v6e:2x2x1
jax: 0.10.0
libtpu: 0.0.40
codegen_flags: <defaults>
</compile_context>

<pallas_src>
import functools

import jax
import jax.numpy as jnp
from jax.experimental import pallas as pl
from jax.experimental.pallas import tpu as pltpu


# ---------------------------------------------------------------------------
# Tiling helpers
# ---------------------------------------------------------------------------

def _pick_tile(dim, cap, multiple):
    """Largest divisor of `dim` that is <= cap and a multiple of `multiple`,
    falling back to the full dim (full-extent blocks are always legal)."""
    if dim <= cap:
        return dim
    for t in range(cap, 0, -1):
        if dim % t == 0 and t % multiple == 0:
            return t
    return dim


def _choose_tm(m):
    """Row-tile: <= 256 rows, and prefer >= 2 M-blocks so BlockSpec double-buffering
    has steps to overlap and v7x's second TensorCore gets work."""
    if m <= 16:
        return m
    t = _pick_tile(m, 256, 8)
    if t == m:                       # single block -> split in half if legal
        half = m // 2
        if half % 8 == 0:
            t = half
    return t


# ---------------------------------------------------------------------------
# Pallas kernels
# ---------------------------------------------------------------------------

def _conv_gemm_kernel(a_ref, w_ref, b_ref, o_ref, acc_ref, *, do_relu):
    # a: (tm, tk) bf16   w: (tk, tn) bf16   b: (1, tn) f32   o: (tm, tn) bf16
    @pl.when(pl.program_id(2) == 0)
    def _():
        acc_ref[...] = jnp.zeros_like(acc_ref)

    acc_ref[...] += jnp.dot(a_ref[...], w_ref[...],
                            preferred_element_type=jnp.float32)

    @pl.when(pl.program_id(2) == pl.num_programs(2) - 1)
    def _():
        out = acc_ref[...] + b_ref[...]
        if do_relu:
            out = jnp.maximum(out, 0.0)
        o_ref[...] = out.astype(o_ref.dtype)


def _conv_gemm_res_kernel(a_ref, w_ref, b_ref, r_ref, o_ref, acc_ref, *, do_relu):
    # Same as above, plus a fused bf16 residual add in the epilogue (math in f32).
    @pl.when(pl.program_id(2) == 0)
    def _():
        acc_ref[...] = jnp.zeros_like(acc_ref)

    acc_ref[...] += jnp.dot(a_ref[...], w_ref[...],
                            preferred_element_type=jnp.float32)

    @pl.when(pl.program_id(2) == pl.num_programs(2) - 1)
    def _():
        out = acc_ref[...] + b_ref[...] + r_ref[...].astype(jnp.float32)
        if do_relu:
            out = jnp.maximum(out, 0.0)
        o_ref[...] = out.astype(o_ref.dtype)


def conv_gemm(patches, wmat, bias, residual, do_relu):
    """patches (M,K) bf16 @ wmat (K,Cout) bf16 + bias [+ residual] [+ relu] -> bf16."""
    M, K = patches.shape
    cout = wmat.shape[1]
    tm = _choose_tm(M)
    tn = 128 if cout == 256 else _pick_tile(cout, 256, 128)   # 2 Cout blocks at 256/512
    tk = _pick_tile(K, 4608, 128)                             # full K for every layer here

    grid = (M // tm, cout // tn, K // tk)

    in_specs = [
        pl.BlockSpec((tm, tk), lambda i, j, k: (i, k)),
        pl.BlockSpec((tk, tn), lambda i, j, k: (k, j)),
        pl.BlockSpec((1, tn), lambda i, j, k: (0, j)),
    ]
    args = [patches, wmat, bias]
    if residual is not None:
        in_specs.append(pl.BlockSpec((tm, tn), lambda i, j, k: (i, j)))
        args.append(residual)
        kernel = functools.partial(_conv_gemm_res_kernel, do_relu=do_relu)
    else:
        kernel = functools.partial(_conv_gemm_kernel, do_relu=do_relu)

    bytes_accessed = (M * K * 2 + K * cout * 2 + cout * 4 + M * cout * 2
                      + (M * cout * 2 if residual is not None else 0))
    cost = pl.CostEstimate(flops=2 * M * K * cout, transcendentals=0,
                           bytes_accessed=bytes_accessed)

    return pl.pallas_call(
        kernel,
        out_shape=jax.ShapeDtypeStruct((M, cout), jnp.bfloat16),
        grid=grid,
        in_specs=in_specs,
        out_specs=pl.BlockSpec((tm, tn), lambda i, j, k: (i, j)),
        scratch_shapes=[pltpu.VMEM((tm, tn), jnp.float32)],
        compiler_params=pltpu.CompilerParams(
            dimension_semantics=("parallel", "parallel", "arbitrary"),
            # Fits every generation (<= 48 MiB also respects v7x's 64 MiB VMEM).
            vmem_limit_bytes=32 * 1024 * 1024,
        ),
        cost_estimate=cost,
    )(*args)


def _maxpool_kernel(x_ref, o_ref):
    # x: (9, tm, C) bf16 -> max over the 9 window taps
    o_ref[...] = jnp.max(x_ref[...], axis=0)


def _pool_fc_kernel(x_ref, w_ref, b_ref, o_ref):
    # x: (N, HW, C) bf16 -> global average pool (f32) -> (N, C) @ (C, classes) + bias
    pooled = jnp.mean(x_ref[...].astype(jnp.float32), axis=1)
    o_ref[...] = (jnp.dot(pooled, w_ref[...], preferred_element_type=jnp.float32)
                  + b_ref[...]).astype(o_ref.dtype)


# ---------------------------------------------------------------------------
# Glue (im2col, lane folding, layer wiring)
# ---------------------------------------------------------------------------

def im2col(x, kh, kw, stride, pad):
    """x: (N, H, W, C) NHWC -> (N*OH*OW, kh*kw*C)."""
    N, H, W, C = x.shape
    OH = (H + 2 * pad - kh) // stride + 1
    OW = (W + 2 * pad - kw) // stride + 1
    xp = jnp.pad(x, ((0, 0), (pad, pad), (pad, pad), (0, 0))) if pad > 0 else x
    views = [xp[:, i:i + stride * OH:stride, j:j + stride * OW:stride, :]
             for i in range(kh) for j in range(kw)]
    patches = jnp.stack(views, axis=3)                      # (N, OH, OW, kh*kw, C)
    return patches.reshape(N * OH * OW, kh * kw * C), OH, OW


def conv_bn(x, w, bn, stride, pad, relu, residual=None):
    """Fused conv + folded-BN [+ residual add] [+ ReLU] via Pallas GEMM (bf16 MXU)."""
    N = x.shape[0]
    kh, kw, cin, cout = w.shape
    scale, bias = bn

    patches, OH, OW = im2col(x.astype(jnp.bfloat16), kh, kw, stride, pad)
    M, K = patches.shape
    # Fold the BN scale into the weight columns (exact in eval mode).
    wmat = w.reshape(kh * kw * cin, cout) * scale           # f32

    # Lane-fold Cout=64 layers: two consecutive spatial rows share one 128-lane output
    # row (same row-major bytes), so HBM stores are lane-dense instead of masked.
    fold = 2 if (cout == 64 and M % 2 == 0) else 1
    if fold == 2:
        patches = patches.reshape(M // 2, 2 * K)            # free row-major view
        z = jnp.zeros_like(wmat)
        wmat = jnp.concatenate(                              # block-diagonal (2K, 128)
            [jnp.concatenate([wmat, z], axis=1),
             jnp.concatenate([z, wmat], axis=1)], axis=0)
        bias = jnp.concatenate([bias, bias], axis=1)         # (1, 128), stays f32
    wmat = wmat.astype(jnp.bfloat16)

    res = None
    if residual is not None:
        res = residual.astype(jnp.bfloat16).reshape(patches.shape[0], cout * fold)

    out = conv_gemm(patches, wmat, bias, res, relu)          # bf16 (M//fold, cout*fold)
    return out.reshape(N, OH, OW, cout)


def maxpool_3x3_s2(x):
    # bf16 9-tap max; C=64 is lane-folded to a 128-wide output for dense stores.
    N, H, W, C = x.shape
    k, stride, pad = 3, 2, 1
    OH = (H + 2 * pad - k) // stride + 1
    OW = (W + 2 * pad - k) // stride + 1
    xp = jnp.pad(x, ((0, 0), (pad, pad), (pad, pad), (0, 0)),
                 constant_values=-jnp.inf)
    views = [xp[:, i:i + stride * OH:stride, j:j + stride * OW:stride, :]
             for i in range(k) for j in range(k)]
    M = N * OH * OW
    stacked = jnp.stack(views, axis=0).reshape(k * k, M, C)
    fold = 2 if (C == 64 and M % 2 == 0) else 1
    Mf, Cf = M // fold, C * fold
    stacked = stacked.reshape(k * k, Mf, Cf)
    tm = _choose_tm(Mf)
    out = pl.pallas_call(
        _maxpool_kernel,
        out_shape=jax.ShapeDtypeStruct((Mf, Cf), jnp.bfloat16),
        grid=(Mf // tm,),
        in_specs=[pl.BlockSpec((k * k, tm, Cf), lambda i: (0, i, 0))],
        out_specs=pl.BlockSpec((tm, Cf), lambda i: (i, 0)),
        compiler_params=pltpu.CompilerParams(
            dimension_semantics=("parallel",),
            vmem_limit_bytes=32 * 1024 * 1024,
        ),
    )(stacked)
    return out.reshape(N, OH, OW, C)


def pool_fc(x, fc_w, fc_b):
    N, H, W, C = x.shape
    xr = x.reshape(N, H * W, C)
    num_classes = fc_w.shape[1]
    return pl.pallas_call(
        _pool_fc_kernel,
        out_shape=jax.ShapeDtypeStruct((N, num_classes), jnp.float32),
        grid=(1,),
        in_specs=[
            pl.BlockSpec((N, H * W, C), lambda i: (0, 0, 0)),
            pl.BlockSpec((C, num_classes), lambda i: (0, 0)),
            pl.BlockSpec((1, num_classes), lambda i: (0, 0)),
        ],
        out_specs=pl.BlockSpec((N, num_classes), lambda i: (0, 0)),
    )(xr, fc_w, fc_b)


def basic_block(x, blk):
    """out = relu(bn2(conv2(relu(bn1(conv1(x))))) + downsample(x or identity))."""
    identity = x
    out = conv_bn(x, blk['conv1_w'], blk['bn1'], blk['stride'], 1, relu=True)
    if 'down_w' in blk:
        identity = conv_bn(x, blk['down_w'], blk['down_bn'], blk['stride'], 0, relu=False)
    # conv2 + bn2 + residual add + relu fully fused in the Pallas GEMM epilogue
    out = conv_bn(out, blk['conv2_w'], blk['bn2'], 1, 1, relu=True, residual=identity)
    return out


def resnet_forward(params, x_nchw):
    # NCHW -> NHWC and drop to bf16 once; the whole activation stream stays bf16.
    x = jnp.transpose(x_nchw, (0, 2, 3, 1)).astype(jnp.bfloat16)
    # Stem: K = 7*7*3 = 147 uses a full-extent K block (no zero-padding pass).
    x = conv_bn(x, params['stem_w'], params['stem_bn'], 2, 3, relu=True)
    x = maxpool_3x3_s2(x)
    for blocks in params['stages']:
        for blk in blocks:
            x = basic_block(x, blk)
    return pool_fc(x, params['fc_w'], params['fc_b'])             # (N, num_classes) f32


# ---------------------------------------------------------------------------
# Deterministic parameter init (matches module __init__ shapes, ResNet-18)
# ---------------------------------------------------------------------------

def init_params(key, num_classes=10):
    layers = (2, 2, 2, 2)                        # ResNet-18, BasicBlock (expansion=1)
    planes_per_stage = (64, 128, 256, 512)
    keys = iter(jax.random.split(key, 64))

    def kaiming(k, kh, kw, cin, cout):           # kaiming_normal_, fan_out, relu
        std = (2.0 / (kh * kw * cout)) ** 0.5
        return (std * jax.random.normal(k, (kh, kw, cin, cout))).astype(jnp.float32)

    def bn_fold(c, eps=1e-5):                    # gamma=1, beta=0, running mean/var=0/1
        gamma = jnp.ones((c,), jnp.float32)
        beta = jnp.zeros((c,), jnp.float32)
        mean = jnp.zeros((c,), jnp.float32)
        var = jnp.ones((c,), jnp.float32)
        scale = gamma / jnp.sqrt(var + eps)
        bias = beta - mean * scale
        return scale.reshape(1, -1), bias.reshape(1, -1)

    params = {
        'stem_w': kaiming(next(keys), 7, 7, 3, 64),
        'stem_bn': bn_fold(64),
    }

    inplanes = 64
    stages = []
    for s, (planes, nblocks) in enumerate(zip(planes_per_stage, layers)):
        stage_stride = 1 if s == 0 else 2
        blocks = []
        for b in range(nblocks):
            bstride = stage_stride if b == 0 else 1
            blk = {
                'stride': bstride,
                'conv1_w': kaiming(next(keys), 3, 3, inplanes, planes),
                'bn1': bn_fold(planes),
                'conv2_w': kaiming(next(keys), 3, 3, planes, planes),
                'bn2': bn_fold(planes),
            }
            if bstride != 1 or inplanes != planes:
                blk['down_w'] = kaiming(next(keys), 1, 1, inplanes, planes)
                blk['down_bn'] = bn_fold(planes)
            blocks.append(blk)
            inplanes = planes
        stages.append(blocks)
    params['stages'] = stages

    fan_in = 512
    bound = 1.0 / (fan_in ** 0.5)                # nn.Linear default init
    kw_, kb_ = jax.random.split(next(keys))
    params['fc_w'] = jax.random.uniform(kw_, (512, num_classes), jnp.float32, -bound, bound)
    params['fc_b'] = jax.random.uniform(kb_, (1, num_classes), jnp.float32, -bound, bound)
    return params


# ---------------------------------------------------------------------------

if __name__ == "__main__":
    key = jax.random.PRNGKey(0)
    params = init_params(key, num_classes=10)
    x = jax.random.normal(jax.random.PRNGKey(0), (2, 3, 64, 64), jnp.float32)  # NCHW input
    logits = resnet_forward(params, x)
    jax.block_until_ready(logits)
    assert logits.shape == (2, 10) and bool(jnp.all(jnp.isfinite(logits)))
    print("KERNEL_OK")
</pallas_src>

<mosaic_0001>
module attributes {stable_mosaic.version = 11 : i64} {
  func.func @_conv_gemm_kernel(%arg0: i32, %arg1: i32, %arg2: i32, %arg3: memref<256x294xbf16, #tpu.memory_space<vmem>>, %arg4: memref<294x128xbf16, #tpu.memory_space<vmem>>, %arg5: memref<1x128xf32, #tpu.memory_space<vmem>>, %arg6: memref<256x128xbf16, #tpu.memory_space<vmem>>, %arg7: memref<256x128xf32, #tpu.memory_space<vmem>>) attributes {dimension_semantics = [#tpu.dimension_semantics<parallel>, #tpu.dimension_semantics<parallel>, #tpu.dimension_semantics<arbitrary>], iteration_bounds = array<i64: 4, 1, 1>, scalar_prefetch = 0 : i64, scratch_operands = 1 : i64, tpu.core_type = #tpu.core_type<tc>, window_params = [{transform_indices = @transform_0, window_bounds = array<i64: 256, 294>}, {transform_indices = @transform_1, window_bounds = array<i64: 294, 128>}, {transform_indices = @transform_2, window_bounds = array<i64: 1, 128>}, {transform_indices = @transform_3, window_bounds = array<i64: 256, 128>}]} {
    %c0_i32 = arith.constant 0 : i32
    %0 = arith.cmpi eq, %arg2, %c0_i32 : i32
    %1 = arith.extui %0 : i1 to i32
    %c0_i32_0 = arith.constant 0 : i32
    %2 = arith.cmpi ne, %1, %c0_i32_0 : i32
    scf.if %2 {
      %cst_10 = arith.constant 0.000000e+00 : f32
      %12 = vector.broadcast %cst_10 : f32 to vector<256x128xf32>
      %c0_11 = arith.constant 0 : index
      %c0_12 = arith.constant 0 : index
      %13 = vector.load %arg7[%c0_11, %c0_12] : memref<256x128xf32, #tpu.memory_space<vmem>>, vector<256x128xf32>
      tpu.vector_store %arg7[%c0_11, %c0_12], %12 {strides = array<i32>} : memref<256x128xf32, #tpu.memory_space<vmem>>, vector<256x128xf32>,
    } else {
    }
    %c0 = arith.constant 0 : index
    %c0_1 = arith.constant 0 : index
    %3 = vector.load %arg7[%c0, %c0_1] : memref<256x128xf32, #tpu.memory_space<vmem>>, vector<256x128xf32>
    %c0_2 = arith.constant 0 : index
    %c0_3 = arith.constant 0 : index
    %4 = vector.load %arg3[%c0_2, %c0_3] : memref<256x294xbf16, #tpu.memory_space<vmem>>, vector<256x294xbf16>
    %c0_4 = arith.constant 0 : index
    %c0_5 = arith.constant 0 : index
    %5 = vector.load %arg4[%c0_4, %c0_5] : memref<294x128xbf16, #tpu.memory_space<vmem>>, vector<294x128xbf16>
    %cst = arith.constant dense<0.000000e+00> : vector<256x128xf32>
    %6 = tpu.matmul %4, %5, %cst {dimension_numbers = #tpu.dot_dimension_numbers<[1], [0], [0], [1], [0, 0, 1, 1], [], []>} : vector<256x294xbf16>, vector<294x128xbf16>, vector<256x128xf32> -> vector<256x128xf32>
    %7 = arith.addf %3, %6 : vector<256x128xf32>
    %c0_6 = arith.constant 0 : index
    %c0_7 = arith.constant 0 : index
    %8 = vector.load %arg7[%c0_6, %c0_7] : memref<256x128xf32, #tpu.memory_space<vmem>>, vector<256x128xf32>
    tpu.vector_store %arg7[%c0_6, %c0_7], %7 {strides = array<i32>} : memref<256x128xf32, #tpu.memory_space<vmem>>, vector<256x128xf32>,
    %c0_i32_8 = arith.constant 0 : i32
    %9 = arith.cmpi eq, %arg2, %c0_i32_8 : i32
    %10 = arith.extui %9 : i1 to i32
    %c0_i32_9 = arith.constant 0 : i32
    %11 = arith.cmpi ne, %10, %c0_i32_9 : i32
    scf.if %11 {
      %c0_10 = arith.constant 0 : index
      %c0_11 = arith.constant 0 : index
      %12 = vector.load %arg7[%c0_10, %c0_11] : memref<256x128xf32, #tpu.memory_space<vmem>>, vector<256x128xf32>
      %c0_12 = arith.constant 0 : index
      %c0_13 = arith.constant 0 : index
      %13 = vector.load %arg5[%c0_12, %c0_13] : memref<1x128xf32, #tpu.memory_space<vmem>>, vector<1x128xf32>
      %14 = vector.broadcast %13 : vector<1x128xf32> to vector<256x128xf32>
      %15 = arith.addf %12, %14 : vector<256x128xf32>
      %cst_14 = arith.constant 0.000000e+00 : f32
      %16 = vector.broadcast %cst_14 : f32 to vector<256x128xf32>
      %17 = arith.maximumf %15, %16 : vector<256x128xf32>
      %18 = arith.truncf %17 : vector<256x128xf32> to vector<256x128xbf16>
      %c0_15 = arith.constant 0 : index
      %c0_16 = arith.constant 0 : index
      %19 = vector.load %arg6[%c0_15, %c0_16] : memref<256x128xbf16, #tpu.memory_space<vmem>>, vector<256x128xbf16>
      tpu.vector_store %arg6[%c0_15, %c0_16], %18 {strides = array<i32>} : memref<256x128xbf16, #tpu.memory_space<vmem>>, vector<256x128xbf16>,
    } else {
    }
    return
  }
  func.func @transform_0(%arg0: i32, %arg1: i32, %arg2: i32) -> (i32, i32) {
    %c0_i32 = arith.constant 0 : i32
    return %arg0, %arg2 : i32, i32
  }
  func.func @transform_1(%arg0: i32, %arg1: i32, %arg2: i32) -> (i32, i32) {
    %c0_i32 = arith.constant 0 : i32
    return %arg2, %arg1 : i32, i32
  }
  func.func @transform_2(%arg0: i32, %arg1: i32, %arg2: i32) -> (i32, i32) {
    %c0_i32 = arith.constant 0 : i32
    %c0_i32_0 = arith.constant 0 : i32
    return %c0_i32, %arg1 : i32, i32
  }
  func.func @transform_3(%arg0: i32, %arg1: i32, %arg2: i32) -> (i32, i32) {
    %c0_i32 = arith.constant 0 : i32
    return %arg0, %arg1 : i32, i32
  }
}

</mosaic_0001>

<llo_original>
// kernel: tpu_custom_call.1
$region0: #{tpu_custom_call.1}
  #allocation0 [shape = 'u32[]', space=smem, size = 0x4, offset = 0x4, fixed_abs, tag = 'smem constant byte address 0x4 - core index']
  #allocation1 [shape = 'u32[144,128]{1,0:T(1,128)}', space=vmem, size = 0x12000, scoped, tag = 'internal scratch']
  #allocation2 [shape = 'f32[256,128]{1,0:T(8,128)}', space=vmem, size = 0x20000, scoped, tag = 'scratch operand']
  %s0 = inlined_call_operand.vmem [shape: bf16[1024,294], index: 0, kind: input, shape index: {}]
  %s1 = inlined_call_operand.vmem [shape: bf16[294,128], index: 1, kind: input, shape index: {}]
  %s2 = inlined_call_operand.vmem [shape: f32[1,128], index: 2, kind: input, shape index: {}]
  %s3 = inlined_call_operand.hbm [shape: bf16[1024,128], index: 3, kind: output, shape index: {}]
  %s4 = sld [smem:[#allocation0]]
  $region53: #{tpu_custom_call.1} parent=0
    _
  %s6 = ssub.s32 1, %s4
  %s7 = scalar_select 0, %s6, %s4
  $region1: #{tpu_custom_call.1} parent=0
    #allocation3 [shape = 'u8[131072]{0}', space=vmem, size = 0x20000, scoped, tag = 'output window, operand 0']
    #allocation4 [shape = 's32[2]{0}', space=sflag, size = 0x8, scoped, tag = 'scoped memory for tpu_custom_call.1']
    %8 = vsyncpa [#allocation4], 0
    %s9 = scalar_lea.sflag [#allocation4], 1
    %10 = vsyncpa %s9, 0
    loop: start=0, step=1, limit=6
    $region2: #{tpu_custom_call.1} parent=1 // loop_pre_header
      _
    $region3: #{tpu_custom_call.1} parent=1 // loop_header
      %s12 = sphi 0, %s16
      %p13 = scmp.ge.s32.totalorder %s12, 6
      %s19 = sphi 0, %s38
      %s20 = sphi 0, %s34
      %s21 = sphi 0, %s30
      %s22 = sphi 0, %s19
      %s23 = sphi 0, %s20
      %s24 = sphi 0, %s21
      %s25 = sphi 0, %s22
      %s26 = sphi 0, %s23
      %s27 = sphi 0, %s24
      %s43 = sphi 0, %s45
      %s46 = sphi 0, %s43
      %s47 = sphi 0, %s46
      %s63 = sphi 0, %s47
      %s71 = sphi 0, %s73
      %s74 = sphi 0, %s71
      %s75 = sphi 0, %s74
      %s91 = sphi 0, %s75
      %s97 = sphi 0, %s99
      %s100 = sphi 0, %s97
      %s101 = sphi 0, %s100
      %s117 = sphi 0, %s101
      %s125 = sphi 0, %s127
      %s128 = sphi 0, %s125
      %s129 = sphi 0, %s128
      %s145 = sphi 0, %s129
    $region4: #{tpu_custom_call.1} parent=1 // loop_header_branch
      %15 = sbr.rel (%p13) target = $region8
    $region5: #{tpu_custom_call.1} parent=1 // loop_body
      %s17 = ssub.s32 %s12, 1
      %s18 = ssub.s32 %s12, 2
      %s28 = sadd.s32 1, %s21
      %p29 = scmp.ge.s32.totalorder %s28, 1
      %s30 = scalar_select %p29, 0, %s28
      %s31 = sadd.s32 1, %s20
      %s32 = scalar_select %p29, %s31, %s20
      %p33 = scmp.ge.s32.totalorder %s32, 1
      %s34 = scalar_select %p33, 0, %s32
      %s35 = sadd.s32 1, %s19
      %s36 = scalar_select %p33, %s35, %s19
      %p37 = scmp.ge.s32.totalorder %s36, 4
      %s38 = scalar_select %p37, 0, %s36
      %s39 = ssub.s32 %s19, %s38
      %s40 = ssub.s32 %s21, %s30
      %s41 = sor.u32 %s39, %s40
      %p42 = scmp.eq.s32.totalorder %s41, 0
      %s44 = sadd.s32 %s43, 1
      %s45 = scalar_select %p42, %s43, %s44
      %p48 = pneg %p42
      %p49 = scmp.eq.s32.totalorder %s12, 3
      %p50 = por %p48, %p49
      %p51 = scmp.ne.s32.totalorder %s43, %s46
      %p52 = scmp.eq.s32.totalorder %s12, 0
      %p53 = por %p51, %p52
      %p54 = scmp.ne.s32.totalorder %s43, %s46
      %p55 = scmp.eq.s32.totalorder %s17, 3
      %p56 = por %p54, %p55
      %p57 = scmp.ne.s32.totalorder %s46, %s47
      %p58 = scmp.eq.s32.totalorder %s17, 0
      %p59 = por %p57, %p58
      %p60 = scmp.ne.s32.totalorder %s46, %s47
      %p61 = scmp.eq.s32.totalorder %s18, 3
      %p62 = por %p60, %p61
      %p64 = scmp.ne.s32.totalorder %s47, %s63
      %p65 = scmp.eq.s32.totalorder %s18, 0
      %p66 = por %p64, %p65
      %s67 = ssub.s32 %s21, %s30
      %s68 = ssub.s32 %s20, %s34
      %s69 = sor.u32 %s67, %s68
      %p70 = scmp.eq.s32.totalorder %s69, 0
      %s72 = sadd.s32 %s71, 1
      %s73 = scalar_select %p70, %s71, %s72
      %p76 = pneg %p70
      %p77 = scmp.eq.s32.totalorder %s12, 3
      %p78 = por %p76, %p77
      %p79 = scmp.ne.s32.totalorder %s71, %s74
      %p80 = scmp.eq.s32.totalorder %s12, 0
      %p81 = por %p79, %p80
      %p82 = scmp.ne.s32.totalorder %s71, %s74
      %p83 = scmp.eq.s32.totalorder %s17, 3
      %p84 = por %p82, %p83
      %p85 = scmp.ne.s32.totalorder %s74, %s75
      %p86 = scmp.eq.s32.totalorder %s17, 0
      %p87 = por %p85, %p86
      %p88 = scmp.ne.s32.totalorder %s74, %s75
      %p89 = scmp.eq.s32.totalorder %s18, 3
      %p90 = por %p88, %p89
      %p92 = scmp.ne.s32.totalorder %s75, %s91
      %p93 = scmp.eq.s32.totalorder %s18, 0
      %p94 = por %p92, %p93
      %s95 = ssub.s32 %s20, %s34
      %p96 = scmp.eq.s32.totalorder %s95, 0
      %s98 = sadd.s32 %s97, 1
      %s99 = scalar_select %p96, %s97, %s98
      %p102 = pneg %p96
      %p103 = scmp.eq.s32.totalorder %s12, 3
      %p104 = por %p102, %p103
      %p105 = scmp.ne.s32.totalorder %s97, %s100
      %p106 = scmp.eq.s32.totalorder %s12, 0
      %p107 = por %p105, %p106
      %p108 = scmp.ne.s32.totalorder %s97, %s100
      %p109 = scmp.eq.s32.totalorder %s17, 3
      %p110 = por %p108, %p109
      %p111 = scmp.ne.s32.totalorder %s100, %s101
      %p112 = scmp.eq.s32.totalorder %s17, 0
      %p113 = por %p111, %p112
      %p114 = scmp.ne.s32.totalorder %s100, %s101
      %p115 = scmp.eq.s32.totalorder %s18, 3
      %p116 = por %p114, %p115
      %p118 = scmp.ne.s32.totalorder %s101, %s117
      %p119 = scmp.eq.s32.totalorder %s18, 0
      %p120 = por %p118, %p119
      %s121 = ssub.s32 %s19, %s38
      %s122 = ssub.s32 %s20, %s34
      %s123 = sor.u32 %s121, %s122
      %p124 = scmp.eq.s32.totalorder %s123, 0
      %s126 = sadd.s32 %s125, 1
      %s127 = scalar_select %p124, %s125, %s126
      %p130 = pneg %p124
      %p131 = scmp.eq.s32.totalorder %s12, 3
      %p132 = por %p130, %p131
      %p133 = scmp.ne.s32.totalorder %s125, %s128
      %p134 = scmp.eq.s32.totalorder %s12, 0
      %p135 = por %p133, %p134
      %p136 = scmp.ne.s32.totalorder %s125, %s128
      %p137 = scmp.eq.s32.totalorder %s17, 3
      %p138 = por %p136, %p137
      %p139 = scmp.ne.s32.totalorder %s128, %s129
      %p140 = scmp.eq.s32.totalorder %s17, 0
      %p141 = por %p139, %p140
      %p142 = scmp.ne.s32.totalorder %s128, %s129
      %p143 = scmp.eq.s32.totalorder %s18, 3
      %p144 = por %p142, %p143
      %p146 = scmp.ne.s32.totalorder %s129, %s145
      %p147 = scmp.eq.s32.totalorder %s18, 0
      %p148 = por %p146, %p147
      %p149 = scmp.le.s32.totalorder 1, %s12
      %p150 = scmp.lt.s32.totalorder %s12, 5
      %p151 = pnand %p149, %p150
      %p152 = pneg %p151
      // Predicated region
      $region9: #{tpu_custom_call.1} parent=5 // pred_check
        _
      $region10: #{tpu_custom_call.1} parent=5 // pred_check_branch
        %154 = sbr.rel (%p151) target = $region12
      $region11: #{tpu_custom_call.1} parent=5 // pred_region
        %s155 = ssub.s32 %s12, 1
        // Predicated region
        $region13: #{tpu_custom_call.1} parent=11 // pred_check
          %p156 = pneg %p87
        $region14: #{tpu_custom_call.1} parent=11 // pred_check_branch
          %158 = sbr.rel (%p156) target = $region16
        $region15: #{tpu_custom_call.1} parent=11 // pred_region
          %s159 = smul.u32 37, %s24
          %p160 = scmp.lt.s32.totalorder %s159, 36
          %s161 = scalar_select %p160, %s159, 36
          %p162 = scmp.lt.s32.totalorder %s23, 0
          %s163 = scalar_select %p162, %s23, 0
          %s164 = sadd.s32 %s163, %s161
          %s165 = smul.addr %s164, 4
          %s166 = scalar_lea.vmem %s1, %s165
          %s167 = smul.u32 37, %s24
        $region16: #{tpu_custom_call.1} parent=11 // pred_fallthru
          _
        // Predicated region
        $region17: #{tpu_custom_call.1} parent=11 // pred_check
          %p168 = pneg %p113
        $region18: #{tpu_custom_call.1} parent=11 // pred_check_branch
          %170 = sbr.rel (%p168) target = $region20
        $region19: #{tpu_custom_call.1} parent=11 // pred_region
          %p171 = scmp.lt.s32.totalorder %s23, 0
          %s172 = scalar_select %p171, %s23, 0
          %s173 = scalar_lea.vmem %s2, %s172
        $region20: #{tpu_custom_call.1} parent=11 // pred_fallthru
          _
      $region12: #{tpu_custom_call.1} parent=5 // pred_fallthru
        _
      %p174 = scmp.lt.s32.totalorder %s12, 4
      // Predicated region
      $region21: #{tpu_custom_call.1} parent=5 // pred_check
        %p175 = pneg %p174
      $region22: #{tpu_custom_call.1} parent=5 // pred_check_branch
        %177 = sbr.rel (%p175) target = $region24
      $region23: #{tpu_custom_call.1} parent=5 // pred_region
        // Predicated region
        $region25: #{tpu_custom_call.1} parent=23 // pred_check
          %p178 = pneg %p53
        $region26: #{tpu_custom_call.1} parent=23 // pred_check_branch
          %180 = sbr.rel (%p178) target = $region28
        $region27: #{tpu_custom_call.1} parent=23 // pred_region
          %s181 = smul.u32 32, %s19
          %s182 = smul.u32 3, %s21
          %p183 = scmp.lt.s32.totalorder %s181, 127
          %s184 = scalar_select %p183, %s181, 127
          %p185 = scmp.lt.s32.totalorder %s182, 2
          %s186 = scalar_select %p185, %s182, 2
          %s187 = smul.addr %s184, 3
          %s188 = sadd.s32 %s186, %s187
          %s189 = smul.addr %s188, 4
          %s190 = scalar_lea.vmem %s0, %s189
          %s191 = smul.u32 32, %s19
          %s192 = smul.u32 3, %s21
        $region28: #{tpu_custom_call.1} parent=23 // pred_fallthru
          _
      $region24: #{tpu_custom_call.1} parent=5 // pred_fallthru
        _
      %p193 = scmp.le.s32.totalorder 1, %s12
      %p194 = scmp.lt.s32.totalorder %s12, 5
      %p195 = pnand %p193, %p194
      %p196 = pneg %p195
      // Predicated region
      $region29: #{tpu_custom_call.1} parent=5 // pred_check
        _
      $region30: #{tpu_custom_call.1} parent=5 // pred_check_branch
        %198 = sbr.rel (%p195) target = $region32
      $region31: #{tpu_custom_call.1} parent=5 // pred_region
        %s199 = ssub.s32 %s12, 1
        %s200 = smul.u32 32, %s22
        %s201 = smul.u32 3, %s24
        %p202 = scmp.lt.s32.totalorder %s200, 127
        %s203 = scalar_select %p202, %s200, 127
        %p204 = scmp.lt.s32.totalorder %s201, 2
        %s205 = scalar_select %p204, %s201, 2
        %s206 = smul.addr %s203, 3
        %s207 = sadd.s32 %s205, %s206
        %s208 = smul.addr %s207, 4
        %s209 = scalar_lea.vmem %s0, %s208
        %p210 = pneg %p59
        %p211 = pneg %p56
        %s212 = smul.u32 37, %s24
        %p213 = scmp.lt.s32.totalorder %s212, 36
        %s214 = scalar_select %p213, %s212, 36
        %p215 = scmp.lt.s32.totalorder %s23, 0
        %s216 = scalar_select %p215, %s23, 0
        %s217 = sadd.s32 %s216, %s214
        %s218 = smul.addr %s217, 4
        %s219 = scalar_lea.vmem %s1, %s218
        %p220 = pneg %p87
        %p221 = pneg %p84
        %p222 = scmp.lt.s32.totalorder %s23, 0
        %s223 = scalar_select %p222, %s23, 0
        %s224 = scalar_lea.vmem %s2, %s223
        %p225 = pneg %p113
        %p226 = pneg %p110
        %p227 = pneg %p141
        %p228 = pneg %p138
        %s229 = sand.u32 %s128, 1
        %s230 = scalar_lea.sflag [#allocation4], %s229
        %s231 = sand.u32 %s128, 1
        %s232 = smul.addr %s231, 128
        %s233 = scalar_lea.vmem [#allocation3], %s232
        %s234 = smul.u32 32, %s22
        %s235 = smul.u32 3, %s24
        %p236 = scmp.lt.s32.totalorder %s234, 127
        %s237 = scalar_select %p236, %s234, 127
        %p238 = scmp.lt.s32.totalorder %s235, 2
        %s239 = scalar_select %p238, %s235, 2
        %s240 = smul.addr %s237, 3
        %s241 = sadd.s32 %s239, %s240
        %s242 = smul.addr %s241, 4
        %s243 = scalar_lea.vmem %s0, %s242
        %s244 = smul.u32 32, %s22
        %s245 = smul.u32 3, %s24
        %s246 = smul.u32 37, %s24
        %p247 = scmp.lt.s32.totalorder %s246, 36
        %s248 = scalar_select %p247, %s246, 36
        %p249 = scmp.lt.s32.totalorder %s23, 0
        %s250 = scalar_select %p249, %s23, 0
        %s251 = sadd.s32 %s250, %s248
        %s252 = smul.addr %s251, 4
        %s253 = scalar_lea.vmem %s1, %s252
        %s254 = smul.u32 37, %s24
        %p255 = scmp.lt.s32.totalorder %s23, 0
        %s256 = scalar_select %p255, %s23, 0
        %s257 = scalar_lea.vmem %s2, %s256
        %s258 = smul.u32 32, %s22
        %p260 = scmp.eq.s32.totalorder %s24, 0
        // Predicated region
        $region33: #{tpu_custom_call.1} parent=31 // pred_check
          %p261 = pneg %p260
        $region34: #{tpu_custom_call.1} parent=31 // pred_check_branch
          %263 = sbr.rel (%p261) target = $region36
        $region35: #{tpu_custom_call.1} parent=31 // pred_region
          %264 = vst [vmem:[#allocation2] sm:$0xff] 0.0
          %265 = vst [vmem:[#allocation2 + $0x8] sm:$0xff] 0.0
          %266 = vst [vmem:[#allocation2 + $0x10] sm:$0xff] 0.0
          %267 = vst [vmem:[#allocation2 + $0x18] sm:$0xff] 0.0
          %268 = vst [vmem:[#allocation2 + $0x20] sm:$0xff] 0.0
          %269 = vst [vmem:[#allocation2 + $0x28] sm:$0xff] 0.0
          %270 = vst [vmem:[#allocation2 + $0x30] sm:$0xff] 0.0
          %271 = vst [vmem:[#allocation2 + $0x38] sm:$0xff] 0.0
          %272 = vst [vmem:[#allocation2 + $0x40] sm:$0xff] 0.0
          %273 = vst [vmem:[#allocation2 + $0x48] sm:$0xff] 0.0
          %274 = vst [vmem:[#allocation2 + $0x50] sm:$0xff] 0.0
          %275 = vst [vmem:[#allocation2 + $0x58] sm:$0xff] 0.0
          %276 = vst [vmem:[#allocation2 + $0x60] sm:$0xff] 0.0
          %277 = vst [vmem:[#allocation2 + $0x68] sm:$0xff] 0.0
          %278 = vst [vmem:[#allocation2 + $0x70] sm:$0xff] 0.0
          %279 = vst [vmem:[#allocation2 + $0x78] sm:$0xff] 0.0
          %280 = vst [vmem:[#allocation2 + $0x80] sm:$0xff] 0.0
          %281 = vst [vmem:[#allocation2 + $0x88] sm:$0xff] 0.0
          %282 = vst [vmem:[#allocation2 + $0x90] sm:$0xff] 0.0
          %283 = vst [vmem:[#allocation2 + $0x98] sm:$0xff] 0.0
          %284 = vst [vmem:[#allocation2 + $0xa0] sm:$0xff] 0.0
          %285 = vst [vmem:[#allocation2 + $0xa8] sm:$0xff] 0.0
          %286 = vst [vmem:[#allocation2 + $0xb0] sm:$0xff] 0.0
          %287 = vst [vmem:[#allocation2 + $0xb8] sm:$0xff] 0.0
          %288 = vst [vmem:[#allocation2 + $0xc0] sm:$0xff] 0.0
          %289 = vst [vmem:[#allocation2 + $0xc8] sm:$0xff] 0.0
          %290 = vst [vmem:[#allocation2 + $0xd0] sm:$0xff] 0.0
          %291 = vst [vmem:[#allocation2 + $0xd8] sm:$0xff] 0.0
          %292 = vst [vmem:[#allocation2 + $0xe0] sm:$0xff] 0.0
          %293 = vst [vmem:[#allocation2 + $0xe8] sm:$0xff] 0.0
          %294 = vst [vmem:[#allocation2 + $0xf0] sm:$0xff] 0.0
          %295 = vst [vmem:[#allocation2 + $0xf8] sm:$0xff] 0.0
        $region36: #{tpu_custom_call.1} parent=31 // pred_fallthru
          _
        %v296 = vld [vmem:[#allocation2] sm:$0xff]
        %v297 = vld [vmem:[#allocation2 + $0x8] sm:$0xff]
        %v298 = vld [vmem:[#allocation2 + $0x10] sm:$0xff]
        %v299 = vld [vmem:[#allocation2 + $0x18] sm:$0xff]
        %v300 = vld [vmem:[#allocation2 + $0x20] sm:$0xff]
        %v301 = vld [vmem:[#allocation2 + $0x28] sm:$0xff]
        %v302 = vld [vmem:[#allocation2 + $0x30] sm:$0xff]
        %v303 = vld [vmem:[#allocation2 + $0x38] sm:$0xff]
        %v304 = vld [vmem:[#allocation2 + $0x40] sm:$0xff]
        %v305 = vld [vmem:[#allocation2 + $0x48] sm:$0xff]
        %v306 = vld [vmem:[#allocation2 + $0x50] sm:$0xff]
        %v307 = vld [vmem:[#allocation2 + $0x58] sm:$0xff]
        %v308 = vld [vmem:[#allocation2 + $0x60] sm:$0xff]
        %v309 = vld [vmem:[#allocation2 + $0x68] sm:$0xff]
        %v310 = vld [vmem:[#allocation2 + $0x70] sm:$0xff]
        %v311 = vld [vmem:[#allocation2 + $0x78] sm:$0xff]
        %v312 = vld [vmem:[#allocation2 + $0x80] sm:$0xff]
        %v313 = vld [vmem:[#allocation2 + $0x88] sm:$0xff]
        %v314 = vld [vmem:[#allocation2 + $0x90] sm:$0xff]
        %v315 = vld [vmem:[#allocation2 + $0x98] sm:$0xff]
        %v316 = vld [vmem:[#allocation2 + $0xa0] sm:$0xff]
        %v317 = vld [vmem:[#allocation2 + $0xa8] sm:$0xff]
        %v318 = vld [vmem:[#allocation2 + $0xb0] sm:$0xff]
        %v319 = vld [vmem:[#allocation2 + $0xb8] sm:$0xff]
        %v320 = vld [vmem:[#allocation2 + $0xc0] sm:$0xff]
        %v321 = vld [vmem:[#allocation2 + $0xc8] sm:$0xff]
        %v322 = vld [vmem:[#allocation2 + $0xd0] sm:$0xff]
        %v323 = vld [vmem:[#allocation2 + $0xd8] sm:$0xff]
        %v324 = vld [vmem:[#allocation2 + $0xe0] sm:$0xff]
        %v325 = vld [vmem:[#allocation2 + $0xe8] sm:$0xff]
        %v326 = vld [vmem:[#allocation2 + $0xf0] sm:$0xff]
        %v327 = vld [vmem:[#allocation2 + $0xf8] sm:$0xff]
        %v328 = vld [vmem:[%s243] sm:$0xff]
        %v329 = vld [vmem:[%s243 + $0x8] sm:$0xf]
        %v330 = vld [vmem:[%s243 + $0xc] sm:$0xff]
        %v331 = vld [vmem:[%s243 + $0x14] sm:$0xf]
        %v332 = vld [vmem:[%s243 + $0x18] sm:$0xff]
        %v333 = vld [vmem:[%s243 + $0x20] sm:$0xf]
        %v334 = vld [vmem:[%s243 + $0x24] sm:$0xff]
        %v335 = vld [vmem:[%s243 + $0x2c] sm:$0xf]
        %v336 = vld [vmem:[%s243 + $0x30] sm:$0xff]
        %v337 = vld [vmem:[%s243 + $0x38] sm:$0xf]
        %v338 = vld [vmem:[%s243 + $0x3c] sm:$0xff]
        %v339 = vld [vmem:[%s243 + $0x44] sm:$0xf]
        %v340 = vld [vmem:[%s243 + $0x48] sm:$0xff]
        %v341 = vld [vmem:[%s243 + $0x50] sm:$0xf]
        %v342 = vld [vmem:[%s243 + $0x54] sm:$0xff]
        %v343 = vld [vmem:[%s243 + $0x5c] sm:$0xf]
        %v344 = vld [vmem:[%s243 + $0x60] sm:$0xff]
        %v345 = vld [vmem:[%s243 + $0x68] sm:$0xf]
        %v346 = vld [vmem:[%s243 + $0x6c] sm:$0xff]
        %v347 = vld [vmem:[%s243 + $0x74] sm:$0xf]
        %v348 = vld [vmem:[%s243 + $0x78] sm:$0xff]
        %v349 = vld [vmem:[%s243 + $0x80] sm:$0xf]
        %v350 = vld [vmem:[%s243 + $0x84] sm:$0xff]
        %v351 = vld [vmem:[%s243 + $0x8c] sm:$0xf]
        %v352 = vld [vmem:[%s243 + $0x90] sm:$0xff]
        %v353 = vld [vmem:[%s243 + $0x98] sm:$0xf]
        %v354 = vld [vmem:[%s243 + $0x9c] sm:$0xff]
        %v355 = vld [vmem:[%s243 + $0xa4] sm:$0xf]
        %v356 = vld [vmem:[%s243 + $0xa8] sm:$0xff]
        %v357 = vld [vmem:[%s243 + $0xb0] sm:$0xf]
        %v358 = vld [vmem:[%s243 + $0xb4] sm:$0xff]
        %v359 = vld [vmem:[%s243 + $0xbc] sm:$0xf]
        %v360 = vld [vmem:[%s243 + $0xc0] sm:$0xff]
        %v361 = vld [vmem:[%s243 + $0xc8] sm:$0xf]
        %v362 = vld [vmem:[%s243 + $0xcc] sm:$0xff]
        %v363 = vld [vmem:[%s243 + $0xd4] sm:$0xf]
        %v364 = vld [vmem:[%s243 + $0xd8] sm:$0xff]
        %v365 = vld [vmem:[%s243 + $0xe0] sm:$0xf]
        %v366 = vld [vmem:[%s243 + $0xe4] sm:$0xff]
        %v367 = vld [vmem:[%s243 + $0xec] sm:$0xf]
        %v368 = vld [vmem:[%s243 + $0xf0] sm:$0xff]
        %v369 = vld [vmem:[%s243 + $0xf8] sm:$0xf]
        %v370 = vld [vmem:[%s243 + $0xfc] sm:$0xff]
        %v371 = vld [vmem:[%s243 + $0x104] sm:$0xf]
        %v372 = vld [vmem:[%s243 + $0x108] sm:$0xff]
        %v373 = vld [vmem:[%s243 + $0x110] sm:$0xf]
        %v374 = vld [vmem:[%s243 + $0x114] sm:$0xff]
        %v375 = vld [vmem:[%s243 + $0x11c] sm:$0xf]
        %v376 = vld [vmem:[%s243 + $0x120] sm:$0xff]
        %v377 = vld [vmem:[%s243 + $0x128] sm:$0xf]
        %v378 = vld [vmem:[%s243 + $0x12c] sm:$0xff]
        %v379 = vld [vmem:[%s243 + $0x134] sm:$0xf]
        %v380 = vld [vmem:[%s243 + $0x138] sm:$0xff]
        %v381 = vld [vmem:[%s243 + $0x140] sm:$0xf]
        %v382 = vld [vmem:[%s243 + $0x144] sm:$0xff]
        %v383 = vld [vmem:[%s243 + $0x14c] sm:$0xf]
        %v384 = vld [vmem:[%s243 + $0x150] sm:$0xff]
        %v385 = vld [vmem:[%s243 + $0x158] sm:$0xf]
        %v386 = vld [vmem:[%s243 + $0x15c] sm:$0xff]
        %v387 = vld [vmem:[%s243 + $0x164] sm:$0xf]
        %v388 = vld [vmem:[%s243 + $0x168] sm:$0xff]
        %v389 = vld [vmem:[%s243 + $0x170] sm:$0xf]
        %v390 = vld [vmem:[%s243 + $0x174] sm:$0xff]
        %v391 = vld [vmem:[%s243 + $0x17c] sm:$0xf]
        %v392 = vld [vmem:[%s253] sm:$0xf]
        %v393 = vld [vmem:[%s253 + $0x4] sm:$0xf]
        %v394 = vld [vmem:[%s253 + $0x8] sm:$0xf]
        %v395 = vld [vmem:[%s253 + $0xc] sm:$0xf]
        %v396 = vld [vmem:[%s253 + $0x10] sm:$0xf]
        %v397 = vld [vmem:[%s253 + $0x14] sm:$0xf]
        %v398 = vld [vmem:[%s253 + $0x18] sm:$0xf]
        %v399 = vld [vmem:[%s253 + $0x1c] sm:$0xf]
        %v400 = vld [vmem:[%s253 + $0x20] sm:$0xf]
        %v401 = vld [vmem:[%s253 + $0x24] sm:$0xf]
        %v402 = vld [vmem:[%s253 + $0x28] sm:$0xf]
        %v403 = vld [vmem:[%s253 + $0x2c] sm:$0xf]
        %v404 = vld [vmem:[%s253 + $0x30] sm:$0xf]
        %v405 = vld [vmem:[%s253 + $0x34] sm:$0xf]
        %v406 = vld [vmem:[%s253 + $0x38] sm:$0xf]
        %v407 = vld [vmem:[%s253 + $0x3c] sm:$0xf]
        %v408 = vld [vmem:[%s253 + $0x40] sm:$0xf]
        %v409 = vld [vmem:[%s253 + $0x44] sm:$0xf]
        %v410 = vld [vmem:[%s253 + $0x48] sm:$0xf]
        %v411 = vld [vmem:[%s253 + $0x4c] sm:$0xf]
        %v412 = vld [vmem:[%s253 + $0x50] sm:$0xf]
        %v413 = vld [vmem:[%s253 + $0x54] sm:$0xf]
        %v414 = vld [vmem:[%s253 + $0x58] sm:$0xf]
        %v415 = vld [vmem:[%s253 + $0x5c] sm:$0xf]
        %v416 = vld [vmem:[%s253 + $0x60] sm:$0xf]
        %v417 = vld [vmem:[%s253 + $0x64] sm:$0xf]
        %v418 = vld [vmem:[%s253 + $0x68] sm:$0xf]
        %v419 = vld [vmem:[%s253 + $0x6c] sm:$0xf]
        %v420 = vld [vmem:[%s253 + $0x70] sm:$0xf]
        %v421 = vld [vmem:[%s253 + $0x74] sm:$0xf]
        %v422 = vld [vmem:[%s253 + $0x78] sm:$0xf]
        %v423 = vld [vmem:[%s253 + $0x7c] sm:$0xf]
        %v424 = vld [vmem:[%s253 + $0x80] sm:$0xf]
        %v425 = vld [vmem:[%s253 + $0x84] sm:$0xf]
        %v426 = vld [vmem:[%s253 + $0x88] sm:$0xf]
        %v427 = vld [vmem:[%s253 + $0x8c] sm:$0xf]
        %v428 = vld [vmem:[%s253 + $0x90] sm:$0x7]
        %v493 = vunpack.c.l.b16 %v328
        %v494 = vunpack.c.h.b16 %v328
        %v495 = vunpack.c.l.b16 %v329
        %v496 = vunpack.c.l.b16 %v330
        %v497 = vunpack.c.h.b16 %v330
        %v498 = vunpack.c.l.b16 %v331
        %v499 = vunpack.c.l.b16 %v332
        %v500 = vunpack.c.h.b16 %v332
        %v501 = vunpack.c.l.b16 %v333
        %v502 = vunpack.c.l.b16 %v334
        %v503 = vunpack.c.h.b16 %v334
        %v504 = vunpack.c.l.b16 %v335
        %v505 = vunpack.c.l.b16 %v336
        %v506 = vunpack.c.h.b16 %v336
        %v507 = vunpack.c.l.b16 %v337
        %v508 = vunpack.c.l.b16 %v338
        %v509 = vunpack.c.h.b16 %v338
        %v510 = vunpack.c.l.b16 %v339
        %v511 = vunpack.c.l.b16 %v340
        %v512 = vunpack.c.h.b16 %v340
        %v513 = vunpack.c.l.b16 %v341
        %v514 = vunpack.c.l.b16 %v342
        %v515 = vunpack.c.h.b16 %v342
        %v516 = vunpack.c.l.b16 %v343
        %v517 = vunpack.c.l.b16 %v344
        %v518 = vunpack.c.h.b16 %v344
        %v519 = vunpack.c.l.b16 %v345
        %v520 = vunpack.c.l.b16 %v346
        %v521 = vunpack.c.h.b16 %v346
        %v522 = vunpack.c.l.b16 %v347
        %v523 = vunpack.c.l.b16 %v348
        %v524 = vunpack.c.h.b16 %v348
        %v525 = vunpack.c.l.b16 %v349
        %v526 = vunpack.c.l.b16 %v350
        %v527 = vunpack.c.h.b16 %v350
        %v528 = vunpack.c.l.b16 %v351
        %v529 = vunpack.c.l.b16 %v352
        %v530 = vunpack.c.h.b16 %v352
        %v531 = vunpack.c.l.b16 %v353
        %v532 = vunpack.c.l.b16 %v354
        %v533 = vunpack.c.h.b16 %v354
        %v534 = vunpack.c.l.b16 %v355
        %v535 = vunpack.c.l.b16 %v356
        %v536 = vunpack.c.h.b16 %v356
        %v537 = vunpack.c.l.b16 %v357
        %v538 = vunpack.c.l.b16 %v358
        %v539 = vunpack.c.h.b16 %v358
        %v540 = vunpack.c.l.b16 %v359
        %v541 = vunpack.c.l.b16 %v360
        %v542 = vunpack.c.h.b16 %v360
        %v543 = vunpack.c.l.b16 %v361
        %v544 = vunpack.c.l.b16 %v362
        %v545 = vunpack.c.h.b16 %v362
        %v546 = vunpack.c.l.b16 %v363
        %v547 = vunpack.c.l.b16 %v364
        %v548 = vunpack.c.h.b16 %v364
        %v549 = vunpack.c.l.b16 %v365
        %v550 = vunpack.c.l.b16 %v366
        %v551 = vunpack.c.h.b16 %v366
        %v552 = vunpack.c.l.b16 %v367
        %v553 = vunpack.c.l.b16 %v368
        %v554 = vunpack.c.h.b16 %v368
        %v555 = vunpack.c.l.b16 %v369
        %v556 = vunpack.c.l.b16 %v370
        %v557 = vunpack.c.h.b16 %v370
        %v558 = vunpack.c.l.b16 %v371
        %v559 = vunpack.c.l.b16 %v372
        %v560 = vunpack.c.h.b16 %v372
        %v561 = vunpack.c.l.b16 %v373
        %v562 = vunpack.c.l.b16 %v374
        %v563 = vunpack.c.h.b16 %v374
        %v564 = vunpack.c.l.b16 %v375
        %v565 = vunpack.c.l.b16 %v376
        %v566 = vunpack.c.h.b16 %v376
        %v567 = vunpack.c.l.b16 %v377
        %v568 = vunpack.c.l.b16 %v378
        %v569 = vunpack.c.h.b16 %v378
        %v570 = vunpack.c.l.b16 %v379
        %v571 = vunpack.c.l.b16 %v380
        %v572 = vunpack.c.h.b16 %v380
        %v573 = vunpack.c.l.b16 %v381
        %v574 = vunpack.c.l.b16 %v382
        %v575 = vunpack.c.h.b16 %v382
        %v576 = vunpack.c.l.b16 %v383
        %v577 = vunpack.c.l.b16 %v384
        %v578 = vunpack.c.h.b16 %v384
        %v579 = vunpack.c.l.b16 %v385
        %v580 = vunpack.c.l.b16 %v386
        %v581 = vunpack.c.h.b16 %v386
        %v582 = vunpack.c.l.b16 %v387
        %v583 = vunpack.c.l.b16 %v388
        %v584 = vunpack.c.h.b16 %v388
        %v585 = vunpack.c.l.b16 %v389
        %v586 = vunpack.c.l.b16 %v390
        %v587 = vunpack.c.h.b16 %v390
        %v588 = vunpack.c.l.b16 %v391
        %v589 = vpack.c.b16 %v496, %v493
        %v590 = vpack.c.b16 %v497, %v494
        %v591 = vpack.c.b16 %v498, %v495
        %v592 = vpack.c.b16 %v502, %v499
        %v593 = vpack.c.b16 %v503, %v500
        %v594 = vpack.c.b16 %v504, %v501
        %v595 = vpack.c.b16 %v508, %v505
        %v596 = vpack.c.b16 %v509, %v506
        %v597 = vpack.c.b16 %v510, %v507
        %v598 = vpack.c.b16 %v514, %v511
        %v599 = vpack.c.b16 %v515, %v512
        %v600 = vpack.c.b16 %v516, %v513
        %v601 = vpack.c.b16 %v520, %v517
        %v602 = vpack.c.b16 %v521, %v518
        %v603 = vpack.c.b16 %v522, %v519
        %v604 = vpack.c.b16 %v526, %v523
        %v605 = vpack.c.b16 %v527, %v524
        %v606 = vpack.c.b16 %v528, %v525
        %v607 = vpack.c.b16 %v532, %v529
        %v608 = vpack.c.b16 %v533, %v530
        %v609 = vpack.c.b16 %v534, %v531
        %v610 = vpack.c.b16 %v538, %v535
        %v611 = vpack.c.b16 %v539, %v536
        %v612 = vpack.c.b16 %v540, %v537
        %v613 = vpack.c.b16 %v544, %v541
        %v614 = vpack.c.b16 %v545, %v542
        %v615 = vpack.c.b16 %v546, %v543
        %v616 = vpack.c.b16 %v550, %v547
        %v617 = vpack.c.b16 %v551, %v548
        %v618 = vpack.c.b16 %v552, %v549
        %v619 = vpack.c.b16 %v556, %v553
        %v620 = vpack.c.b16 %v557, %v554
        %v621 = vpack.c.b16 %v558, %v555
        %v622 = vpack.c.b16 %v562, %v559
        %v623 = vpack.c.b16 %v563, %v560
        %v624 = vpack.c.b16 %v564, %v561
        %v625 = vpack.c.b16 %v568, %v565
        %v626 = vpack.c.b16 %v569, %v566
        %v627 = vpack.c.b16 %v570, %v567
        %v628 = vpack.c.b16 %v574, %v571
        %v629 = vpack.c.b16 %v575, %v572
        %v630 = vpack.c.b16 %v576, %v573
        %v631 = vpack.c.b16 %v580, %v577
        %v632 = vpack.c.b16 %v581, %v578
        %v633 = vpack.c.b16 %v582, %v579
        %v634 = vpack.c.b16 %v586, %v583
        %v635 = vpack.c.b16 %v587, %v584
        %v636 = vpack.c.b16 %v588, %v585
        %v706 = vunpack.c.l.b16 %v392
        %v707 = vunpack.c.l.b16 %v393
        %v708 = vunpack.c.l.b16 %v394
        %v709 = vunpack.c.l.b16 %v395
        %v710 = vunpack.c.l.b16 %v396
        %v711 = vunpack.c.l.b16 %v397
        %v712 = vunpack.c.l.b16 %v398
        %v713 = vunpack.c.l.b16 %v399
        %v714 = vunpack.c.l.b16 %v400
        %v715 = vunpack.c.l.b16 %v401
        %v716 = vunpack.c.l.b16 %v402
        %v717 = vunpack.c.l.b16 %v403
        %v718 = vunpack.c.l.b16 %v404
        %v719 = vunpack.c.l.b16 %v405
        %v720 = vunpack.c.l.b16 %v406
        %v721 = vunpack.c.l.b16 %v407
        %v722 = vunpack.c.l.b16 %v408
        %v723 = vunpack.c.l.b16 %v409
        %v724 = vunpack.c.l.b16 %v410
        %v725 = vunpack.c.l.b16 %v411
        %v726 = vunpack.c.l.b16 %v412
        %v727 = vunpack.c.l.b16 %v413
        %v728 = vunpack.c.l.b16 %v414
        %v729 = vunpack.c.l.b16 %v415
        %v730 = vunpack.c.l.b16 %v416
        %v731 = vunpack.c.l.b16 %v417
        %v732 = vunpack.c.l.b16 %v418
        %v733 = vunpack.c.l.b16 %v419
        %v734 = vunpack.c.l.b16 %v420
        %v735 = vunpack.c.l.b16 %v421
        %v736 = vunpack.c.l.b16 %v422
        %v737 = vunpack.c.l.b16 %v423
        %v738 = vunpack.c.l.b16 %v424
        %v739 = vunpack.c.l.b16 %v425
        %v740 = vunpack.c.l.b16 %v426
        %v741 = vunpack.c.l.b16 %v427
        %v742 = vunpack.c.l.b16 %v428
        %v743 = vpack.c.b16 %v707, %v706
        %v744 = vpack.c.b16 %v709, %v708
        %v745 = vpack.c.b16 %v711, %v710
        %v746 = vpack.c.b16 %v713, %v712
        %v747 = vpack.c.b16 %v715, %v714
        %v748 = vpack.c.b16 %v717, %v716
        %v749 = vpack.c.b16 %v719, %v718
        %v750 = vpack.c.b16 %v721, %v720
        %v751 = vpack.c.b16 %v723, %v722
        %v752 = vpack.c.b16 %v725, %v724
        %v753 = vpack.c.b16 %v727, %v726
        %v754 = vpack.c.b16 %v729, %v728
        %v755 = vpack.c.b16 %v731, %v730
        %v756 = vpack.c.b16 %v733, %v732
        %v757 = vpack.c.b16 %v735, %v734
        %v758 = vpack.c.b16 %v737, %v736
        %v759 = vpack.c.b16 %v739, %v738
        %v760 = vpack.c.b16 %v741, %v740
        %v761 = vpack.c.b16 %v742, %v742
        %vm780 = vcmask 310272
        %v782 = vsel %vm780, %v591, 0
        %v785 = vsel %vm780, %v594, 0
        %v788 = vsel %vm780, %v597, 0
        %v791 = vsel %vm780, %v600, 0
        %v794 = vsel %vm780, %v603, 0
        %v797 = vsel %vm780, %v606, 0
        %v800 = vsel %vm780, %v609, 0
        %v803 = vsel %vm780, %v612, 0
        %v806 = vsel %vm780, %v615, 0
        %v809 = vsel %vm780, %v618, 0
        %v812 = vsel %vm780, %v621, 0
        %v815 = vsel %vm780, %v624, 0
        %v818 = vsel %vm780, %v627, 0
        %v821 = vsel %vm780, %v630, 0
        %v824 = vsel %vm780, %v633, 0
        %v827 = vsel %vm780, %v636, 0
        %vm829 = vcmask 1042432
        %v831 = vsel %vm829, %v761, 0
        %833 = vmatprep.subr.bf16.mxu0 0
        %834 = vmatpush1.bf16.msra.mxu0 %v750
        %835 = vmatprep.subr.bf16.mxu0 0
        %836 = vmatpush1.bf16.msra.mxu0 %v749
        %837 = vmatprep.subr.bf16.mxu0 0
        %838 = vmatpush1.bf16.msra.mxu0 %v748
        %839 = vmatprep.subr.bf16.mxu0 0
        %840 = vmatpush1.bf16.msra.mxu0 %v747
        %841 = vmatprep.subr.bf16.mxu0 0
        %842 = vmatpush1.bf16.msra.mxu0 %v746
        %843 = vmatprep.subr.bf16.mxu0 0
        %844 = vmatpush1.bf16.msra.mxu0 %v745
        %845 = vmatprep.subr.bf16.mxu0 0
        %846 = vmatpush1.bf16.msra.mxu0 %v744
        %847 = vmatprep.subr.bf16.mxu0 0
        %848 = vmatpush1.bf16.msra.mxu0 %v743
        %849 = vmatprep.subr.bf16.mxu0 0
        %850 = vmatpush2.bf16.msra.mxu0 %v758
        %851 = vmatprep.subr.bf16.mxu0 0
        %852 = vmatpush2.bf16.msra.mxu0 %v757
        %853 = vmatprep.subr.bf16.mxu0 0
        %854 = vmatpush2.bf16.msra.mxu0 %v756
        %855 = vmatprep.subr.bf16.mxu0 0
        %856 = vmatpush2.bf16.msra.mxu0 %v755
        %857 = vmatprep.subr.bf16.mxu0 0
        %858 = vmatpush2.bf16.msra.mxu0 %v754
        %859 = vmatprep.subr.bf16.mxu0 0
        %860 = vmatpush2.bf16.msra.mxu0 %v753
        %861 = vmatprep.subr.bf16.mxu0 0
        %862 = vmatpush2.bf16.msra.mxu0 %v752
        %863 = vmatprep.subr.bf16.mxu0 0
        %864 = vmatpush2.bf16.msra.mxu0 %v751
        %865 = vmatprep.mubr.bf16.mxu0 %v590
        %866 = vmatmul.mubr.bf16.gmra.mxu0 %v589
        %v867 = vpop.f32.mrf.mxu0
        %v868 = vadd.f32 0.0, %v867
        %v869 = vpop.f32.mrf.mxu0
        %v870 = vpop.f32.mrf.mxu0
        %v871 = vadd.f32 0.0, %v870
        %v872 = vpop.f32.mrf.mxu0
        %873 = vmatprep.mubr.bf16.mxu0 %v593
        %874 = vmatmul.mubr.bf16.gmra.mxu0 %v592
        %v875 = vpop.f32.mrf.mxu0
        %v876 = vadd.f32 0.0, %v875
        %v877 = vpop.f32.mrf.mxu0
        %v878 = vpop.f32.mrf.mxu0
        %v879 = vadd.f32 0.0, %v878
        %v880 = vpop.f32.mrf.mxu0
        %881 = vmatprep.mubr.bf16.mxu0 %v596
        %882 = vmatmul.mubr.bf16.gmra.mxu0 %v595
        %v883 = vpop.f32.mrf.mxu0
        %v884 = vadd.f32 0.0, %v883
        %v885 = vpop.f32.mrf.mxu0
        %v886 = vpop.f32.mrf.mxu0
        %v887 = vadd.f32 0.0, %v886
        %v888 = vpop.f32.mrf.mxu0
        %889 = vmatprep.mubr.bf16.mxu0 %v599
        %890 = vmatmul.mubr.bf16.gmra.mxu0 %v598
        %v891 = vpop.f32.mrf.mxu0
        %v892 = vadd.f32 0.0, %v891
        %v893 = vpop.f32.mrf.mxu0
        %v894 = vpop.f32.mrf.mxu0
        %v895 = vadd.f32 0.0, %v894
        %v896 = vpop.f32.mrf.mxu0
        %897 = vmatprep.mubr.bf16.mxu0 %v602
        %898 = vmatmul.mubr.bf16.gmra.mxu0 %v601
        %v899 = vpop.f32.mrf.mxu0
        %v900 = vadd.f32 0.0, %v899
        %v901 = vpop.f32.mrf.mxu0
        %v902 = vpop.f32.mrf.mxu0
        %v903 = vadd.f32 0.0, %v902
        %v904 = vpop.f32.mrf.mxu0
        %905 = vmatprep.mubr.bf16.mxu0 %v605
        %906 = vmatmul.mubr.bf16.gmra.mxu0 %v604
        %v907 = vpop.f32.mrf.mxu0
        %v908 = vadd.f32 0.0, %v907
        %v909 = vpop.f32.mrf.mxu0
        %v910 = vpop.f32.mrf.mxu0
        %v911 = vadd.f32 0.0, %v910
        %v912 = vpop.f32.mrf.mxu0
        %913 = vmatprep.mubr.bf16.mxu0 %v608
        %914 = vmatmul.mubr.bf16.gmra.mxu0 %v607
        %v915 = vpop.f32.mrf.mxu0
        %v916 = vadd.f32 0.0, %v915
        %v917 = vpop.f32.mrf.mxu0
        %v918 = vpop.f32.mrf.mxu0
        %v919 = vadd.f32 0.0, %v918
        %v920 = vpop.f32.mrf.mxu0
        %921 = vmatprep.mubr.bf16.mxu0 %v611
        %922 = vmatmul.mubr.bf16.gmra.mxu0 %v610
        %v923 = vpop.f32.mrf.mxu0
        %v924 = vadd.f32 0.0, %v923
        %v925 = vpop.f32.mrf.mxu0
        %v926 = vpop.f32.mrf.mxu0
        %v927 = vadd.f32 0.0, %v926
        %v928 = vpop.f32.mrf.mxu0
        %929 = vmatprep.mubr.bf16.mxu0 %v614
        %930 = vmatmul.mubr.bf16.gmra.mxu0 %v613
        %v931 = vpop.f32.mrf.mxu0
        %v932 = vadd.f32 0.0, %v931
        %v933 = vpop.f32.mrf.mxu0
        %v934 = vpop.f32.mrf.mxu0
        %v935 = vadd.f32 0.0, %v934
        %v936 = vpop.f32.mrf.mxu0
        %937 = vmatprep.mubr.bf16.mxu0 %v617
        %938 = vmatmul.mubr.bf16.gmra.mxu0 %v616
        %v939 = vpop.f32.mrf.mxu0
        %v940 = vadd.f32 0.0, %v939
        %v941 = vpop.f32.mrf.mxu0
        %v942 = vpop.f32.mrf.mxu0
        %v943 = vadd.f32 0.0, %v942
        %v944 = vpop.f32.mrf.mxu0
        %945 = vmatprep.mubr.bf16.mxu0 %v620
        %946 = vmatmul.mubr.bf16.gmra.mxu0 %v619
        %v947 = vpop.f32.mrf.mxu0
        %v948 = vadd.f32 0.0, %v947
        %v949 = vpop.f32.mrf.mxu0
        %v950 = vpop.f32.mrf.mxu0
        %v951 = vadd.f32 0.0, %v950
        %v952 = vpop.f32.mrf.mxu0
        %953 = vmatprep.mubr.bf16.mxu0 %v623
        %954 = vmatmul.mubr.bf16.gmra.mxu0 %v622
        %v955 = vpop.f32.mrf.mxu0
        %v956 = vadd.f32 0.0, %v955
        %v957 = vpop.f32.mrf.mxu0
        %v958 = vpop.f32.mrf.mxu0
        %v959 = vadd.f32 0.0, %v958
        %v960 = vpop.f32.mrf.mxu0
        %961 = vmatprep.mubr.bf16.mxu0 %v626
        %962 = vmatmul.mubr.bf16.gmra.mxu0 %v625
        %v963 = vpop.f32.mrf.mxu0
        %v964 = vadd.f32 0.0, %v963
        %v965 = vpop.f32.mrf.mxu0
        %v966 = vpop.f32.mrf.mxu0
        %v967 = vadd.f32 0.0, %v966
        %v968 = vpop.f32.mrf.mxu0
        %969 = vmatprep.mubr.bf16.mxu0 %v629
        %970 = vmatmul.mubr.bf16.gmra.mxu0 %v628
        %v971 = vpop.f32.mrf.mxu0
        %v972 = vadd.f32 0.0, %v971
        %v973 = vpop.f32.mrf.mxu0
        %v974 = vpop.f32.mrf.mxu0
        %v975 = vadd.f32 0.0, %v974
        %v976 = vpop.f32.mrf.mxu0
        %977 = vmatprep.mubr.bf16.mxu0 %v632
        %978 = vmatmul.mubr.bf16.gmra.mxu0 %v631
        %v979 = vpop.f32.mrf.mxu0
        %v980 = vadd.f32 0.0, %v979
        %v981 = vpop.f32.mrf.mxu0
        %v982 = vpop.f32.mrf.mxu0
        %v983 = vadd.f32 0.0, %v982
        %v984 = vpop.f32.mrf.mxu0
        %985 = vmatprep.mubr.bf16.mxu0 %v635
        %986 = vmatmul.mubr.bf16.gmra.mxu0 %v634
        %v987 = vpop.f32.mrf.mxu0
        %v988 = vadd.f32 0.0, %v987
        %v989 = vpop.f32.mrf.mxu0
        %v990 = vpop.f32.mrf.mxu0
        %v991 = vadd.f32 0.0, %v990
        %v992 = vpop.f32.mrf.mxu0
        %993 = vdwg.mxu0
        %994 = vmatprep.subr.bf16.mxu0 0
        %995 = vmatpush1.bf16.msra.mxu0 0
        %996 = vmatprep.subr.bf16.mxu0 0
        %997 = vmatpush1.bf16.msra.mxu0 0
        %998 = vmatprep.subr.bf16.mxu0 0
        %999 = vmatpush1.bf16.msra.mxu0 0
        %1000 = vmatprep.subr.bf16.mxu0 0
        %1001 = vmatpush1.bf16.msra.mxu0 0
        %1002 = vmatprep.subr.bf16.mxu0 0
        %1003 = vmatpush1.bf16.msra.mxu0 0
        %1004 = vmatprep.subr.bf16.mxu0 0
        %1005 = vmatpush1.bf16.msra.mxu0 %v831
        %1006 = vmatprep.subr.bf16.mxu0 0
        %1007 = vmatpush1.bf16.msra.mxu0 %v760
        %1008 = vmatprep.subr.bf16.mxu0 0
        %1009 = vmatpush1.bf16.msra.mxu0 %v759
        %1010 = vmatprep.subr.bf16.mxu0 0
        %1011 = vmatpush2.bf16.msra.mxu0 0
        %1012 = vmatprep.subr.bf16.mxu0 0
        %1013 = vmatpush2.bf16.msra.mxu0 0
        %1014 = vmatprep.subr.bf16.mxu0 0
        %1015 = vmatpush2.bf16.msra.mxu0 0
        %1016 = vmatprep.subr.bf16.mxu0 0
        %1017 = vmatpush2.bf16.msra.mxu0 0
        %1018 = vmatprep.subr.bf16.mxu0 0
        %1019 = vmatpush2.bf16.msra.mxu0 0
        %1020 = vmatprep.subr.bf16.mxu0 0
        %1021 = vmatpush2.bf16.msra.mxu0 0
        %1022 = vmatprep.subr.bf16.mxu0 0
        %1023 = vmatpush2.bf16.msra.mxu0 0
        %1024 = vmatprep.subr.bf16.mxu0 0
        %1025 = vmatpush2.bf16.msra.mxu0 0
        %1026 = vmatprep.mubr.bf16.mxu0 0
        %1027 = vmatmul.mubr.bf16.gmra.mxu0 %v782
        %v1028 = vpop.f32.mrf.mxu0
        %v1029 = vadd.f32 %v868, %v1028
        %v1030 = vpop.f32.mrf.mxu0
        %v1031 = vpop.f32.mrf.mxu0
        %v1032 = vadd.f32 %v871, %v1031
        %v1033 = vpop.f32.mrf.mxu0
        %1034 = vmatprep.mubr.bf16.mxu0 0
        %1035 = vmatmul.mubr.bf16.gmra.mxu0 %v785
        %v1036 = vpop.f32.mrf.mxu0
        %v1037 = vadd.f32 %v876, %v1036
        %v1038 = vpop.f32.mrf.mxu0
        %v1039 = vpop.f32.mrf.mxu0
        %v1040 = vadd.f32 %v879, %v1039
        %v1041 = vpop.f32.mrf.mxu0
        %1042 = vmatprep.mubr.bf16.mxu0 0
        %1043 = vmatmul.mubr.bf16.gmra.mxu0 %v788
        %v1044 = vpop.f32.mrf.mxu0
        %v1045 = vadd.f32 %v884, %v1044
        %v1046 = vpop.f32.mrf.mxu0
        %v1047 = vpop.f32.mrf.mxu0
        %v1048 = vadd.f32 %v887, %v1047
        %v1049 = vpop.f32.mrf.mxu0
        %1050 = vmatprep.mubr.bf16.mxu0 0
        %1051 = vmatmul.mubr.bf16.gmra.mxu0 %v791
        %v1052 = vpop.f32.mrf.mxu0
        %v1053 = vadd.f32 %v892, %v1052
        %v1054 = vpop.f32.mrf.mxu0
        %v1055 = vpop.f32.mrf.mxu0
        %v1056 = vadd.f32 %v895, %v1055
        %v1057 = vpop.f32.mrf.mxu0
        %1058 = vmatprep.mubr.bf16.mxu0 0
        %1059 = vmatmul.mubr.bf16.gmra.mxu0 %v794
        %v1060 = vpop.f32.mrf.mxu0
        %v1061 = vadd.f32 %v900, %v1060
        %v1062 = vpop.f32.mrf.mxu0
        %v1063 = vpop.f32.mrf.mxu0
        %v1064 = vadd.f32 %v903, %v1063
        %v1065 = vpop.f32.mrf.mxu0
        %1066 = vmatprep.mubr.bf16.mxu0 0
        %1067 = vmatmul.mubr.bf16.gmra.mxu0 %v797
        %v1068 = vpop.f32.mrf.mxu0
        %v1069 = vadd.f32 %v908, %v1068
        %v1070 = vpop.f32.mrf.mxu0
        %v1071 = vpop.f32.mrf.mxu0
        %v1072 = vadd.f32 %v911, %v1071
        %v1073 = vpop.f32.mrf.mxu0
        %1074 = vmatprep.mubr.bf16.mxu0 0
        %1075 = vmatmul.mubr.bf16.gmra.mxu0 %v800
        %v1076 = vpop.f32.mrf.mxu0
        %v1077 = vadd.f32 %v916, %v1076
        %v1078 = vpop.f32.mrf.mxu0
        %v1079 = vpop.f32.mrf.mxu0
        %v1080 = vadd.f32 %v919, %v1079
        %v1081 = vpop.f32.mrf.mxu0
        %1082 = vmatprep.mubr.bf16.mxu0 0
        %1083 = vmatmul.mubr.bf16.gmra.mxu0 %v803
        %v1084 = vpop.f32.mrf.mxu0
        %v1085 = vadd.f32 %v924, %v1084
        %v1086 = vpop.f32.mrf.mxu0
        %v1087 = vpop.f32.mrf.mxu0
        %v1088 = vadd.f32 %v927, %v1087
        %v1089 = vpop.f32.mrf.mxu0
        %1090 = vmatprep.mubr.bf16.mxu0 0
        %1091 = vmatmul.mubr.bf16.gmra.mxu0 %v806
        %v1092 = vpop.f32.mrf.mxu0
        %v1093 = vadd.f32 %v932, %v1092
        %v1094 = vpop.f32.mrf.mxu0
        %v1095 = vpop.f32.mrf.mxu0
        %v1096 = vadd.f32 %v935, %v1095
        %v1097 = vpop.f32.mrf.mxu0
        %1098 = vmatprep.mubr.bf16.mxu0 0
        %1099 = vmatmul.mubr.bf16.gmra.mxu0 %v809
        %v1100 = vpop.f32.mrf.mxu0
        %v1101 = vadd.f32 %v940, %v1100
        %v1102 = vpop.f32.mrf.mxu0
        %v1103 = vpop.f32.mrf.mxu0
        %v1104 = vadd.f32 %v943, %v1103
        %v1105 = vpop.f32.mrf.mxu0
        %1106 = vmatprep.mubr.bf16.mxu0 0
        %1107 = vmatmul.mubr.bf16.gmra.mxu0 %v812
        %v1108 = vpop.f32.mrf.mxu0
        %v1109 = vadd.f32 %v948, %v1108
        %v1110 = vpop.f32.mrf.mxu0
        %v1111 = vpop.f32.mrf.mxu0
        %v1112 = vadd.f32 %v951, %v1111
        %v1113 = vpop.f32.mrf.mxu0
        %1114 = vmatprep.mubr.bf16.mxu0 0
        %1115 = vmatmul.mubr.bf16.gmra.mxu0 %v815
        %v1116 = vpop.f32.mrf.mxu0
        %v1117 = vadd.f32 %v956, %v1116
        %v1118 = vpop.f32.mrf.mxu0
        %v1119 = vpop.f32.mrf.mxu0
        %v1120 = vadd.f32 %v959, %v1119
        %v1121 = vpop.f32.mrf.mxu0
        %1122 = vmatprep.mubr.bf16.mxu0 0
        %1123 = vmatmul.mubr.bf16.gmra.mxu0 %v818
        %v1124 = vpop.f32.mrf.mxu0
        %v1125 = vadd.f32 %v964, %v1124
        %v1126 = vpop.f32.mrf.mxu0
        %v1127 = vpop.f32.mrf.mxu0
        %v1128 = vadd.f32 %v967, %v1127
        %v1129 = vpop.f32.mrf.mxu0
        %1130 = vmatprep.mubr.bf16.mxu0 0
        %1131 = vmatmul.mubr.bf16.gmra.mxu0 %v821
        %v1132 = vpop.f32.mrf.mxu0
        %v1133 = vadd.f32 %v972, %v1132
        %v1134 = vpop.f32.mrf.mxu0
        %v1135 = vpop.f32.mrf.mxu0
        %v1136 = vadd.f32 %v975, %v1135
        %v1137 = vpop.f32.mrf.mxu0
        %1138 = vmatprep.mubr.bf16.mxu0 0
        %1139 = vmatmul.mubr.bf16.gmra.mxu0 %v824
        %v1140 = vpop.f32.mrf.mxu0
        %v1141 = vadd.f32 %v980, %v1140
        %v1142 = vpop.f32.mrf.mxu0
        %v1143 = vpop.f32.mrf.mxu0
        %v1144 = vadd.f32 %v983, %v1143
        %v1145 = vpop.f32.mrf.mxu0
        %1146 = vmatprep.mubr.bf16.mxu0 0
        %1147 = vmatmul.mubr.bf16.gmra.mxu0 %v827
        %v1148 = vpop.f32.mrf.mxu0
        %v1149 = vadd.f32 %v988, %v1148
        %v1150 = vpop.f32.mrf.mxu0
        %v1151 = vpop.f32.mrf.mxu0
        %v1152 = vadd.f32 %v991, %v1151
        %v1153 = vpop.f32.mrf.mxu0
        %1154 = vdwg.mxu0
        %v1155 = vadd.f32 %v296, %v1029
        %v1156 = vadd.f32 %v297, %v1032
        %v1157 = vadd.f32 %v298, %v1037
        %v1158 = vadd.f32 %v299, %v1040
        %v1159 = vadd.f32 %v300, %v1045
        %v1160 = vadd.f32 %v301, %v1048
        %v1161 = vadd.f32 %v302, %v1053
        %v1162 = vadd.f32 %v303, %v1056
        %v1163 = vadd.f32 %v304, %v1061
        %v1164 = vadd.f32 %v305, %v1064
        %v1165 = vadd.f32 %v306, %v1069
        %v1166 = vadd.f32 %v307, %v1072
        %v1167 = vadd.f32 %v308, %v1077
        %v1168 = vadd.f32 %v309, %v1080
        %v1169 = vadd.f32 %v310, %v1085
        %v1170 = vadd.f32 %v311, %v1088
        %v1171 = vadd.f32 %v312, %v1093
        %v1172 = vadd.f32 %v313, %v1096
        %v1173 = vadd.f32 %v314, %v1101
        %v1174 = vadd.f32 %v315, %v1104
        %v1175 = vadd.f32 %v316, %v1109
        %v1176 = vadd.f32 %v317, %v1112
        %v1177 = vadd.f32 %v318, %v1117
        %v1178 = vadd.f32 %v319, %v1120
        %v1179 = vadd.f32 %v320, %v1125
        %v1180 = vadd.f32 %v321, %v1128
        %v1181 = vadd.f32 %v322, %v1133
        %v1182 = vadd.f32 %v323, %v1136
        %v1183 = vadd.f32 %v324, %v1141
        %v1184 = vadd.f32 %v325, %v1144
        %v1185 = vadd.f32 %v326, %v1149
        %v1186 = vadd.f32 %v327, %v1152
        %1187 = vst [vmem:[#allocation2] sm:$0xff] %v1155
        %1188 = vst [vmem:[#allocation2 + $0x8] sm:$0xff] %v1156
        %1189 = vst [vmem:[#allocation2 + $0x10] sm:$0xff] %v1157
        %1190 = vst [vmem:[#allocation2 + $0x18] sm:$0xff] %v1158
        %1191 = vst [vmem:[#allocation2 + $0x20] sm:$0xff] %v1159
        %1192 = vst [vmem:[#allocation2 + $0x28] sm:$0xff] %v1160
        %1193 = vst [vmem:[#allocation2 + $0x30] sm:$0xff] %v1161
        %1194 = vst [vmem:[#allocation2 + $0x38] sm:$0xff] %v1162
        %1195 = vst [vmem:[#allocation2 + $0x40] sm:$0xff] %v1163
        %1196 = vst [vmem:[#allocation2 + $0x48] sm:$0xff] %v1164
        %1197 = vst [vmem:[#allocation2 + $0x50] sm:$0xff] %v1165
        %1198 = vst [vmem:[#allocation2 + $0x58] sm:$0xff] %v1166
        %1199 = vst [vmem:[#allocation2 + $0x60] sm:$0xff] %v1167
        %1200 = vst [vmem:[#allocation2 + $0x68] sm:$0xff] %v1168
        %1201 = vst [vmem:[#allocation2 + $0x70] sm:$0xff] %v1169
        %1202 = vst [vmem:[#allocation2 + $0x78] sm:$0xff] %v1170
        %1203 = vst [vmem:[#allocation2 + $0x80] sm:$0xff] %v1171
        %1204 = vst [vmem:[#allocation2 + $0x88] sm:$0xff] %v1172
        %1205 = vst [vmem:[#allocation2 + $0x90] sm:$0xff] %v1173
        %1206 = vst [vmem:[#allocation2 + $0x98] sm:$0xff] %v1174
        %1207 = vst [vmem:[#allocation2 + $0xa0] sm:$0xff] %v1175
        %1208 = vst [vmem:[#allocation2 + $0xa8] sm:$0xff] %v1176
        %1209 = vst [vmem:[#allocation2 + $0xb0] sm:$0xff] %v1177
        %1210 = vst [vmem:[#allocation2 + $0xb8] sm:$0xff] %v1178
        %1211 = vst [vmem:[#allocation2 + $0xc0] sm:$0xff] %v1179
        %1212 = vst [vmem:[#allocation2 + $0xc8] sm:$0xff] %v1180
        %1213 = vst [vmem:[#allocation2 + $0xd0] sm:$0xff] %v1181
        %1214 = vst [vmem:[#allocation2 + $0xd8] sm:$0xff] %v1182
        %1215 = vst [vmem:[#allocation2 + $0xe0] sm:$0xff] %v1183
        %1216 = vst [vmem:[#allocation2 + $0xe8] sm:$0xff] %v1184
        %1217 = vst [vmem:[#allocation2 + $0xf0] sm:$0xff] %v1185
        %1218 = vst [vmem:[#allocation2 + $0xf8] sm:$0xff] %v1186
        // Predicated region
        $region37: #{tpu_custom_call.1} parent=31 // pred_check
          %p1219 = pneg %p260
        $region38: #{tpu_custom_call.1} parent=31 // pred_check_branch
          %1221 = sbr.rel (%p1219) target = $region40
        $region39: #{tpu_custom_call.1} parent=31 // pred_region
          %v1222 = vld [vmem:[#allocation2] sm:$0xff]
          %v1223 = vld [vmem:[#allocation2 + $0x8] sm:$0xff]
          %v1224 = vld [vmem:[#allocation2 + $0x10] sm:$0xff]
          %v1225 = vld [vmem:[#allocation2 + $0x18] sm:$0xff]
          %v1226 = vld [vmem:[#allocation2 + $0x20] sm:$0xff]
          %v1227 = vld [vmem:[#allocation2 + $0x28] sm:$0xff]
          %v1228 = vld [vmem:[#allocation2 + $0x30] sm:$0xff]
          %v1229 = vld [vmem:[#allocation2 + $0x38] sm:$0xff]
          %v1230 = vld [vmem:[#allocation2 + $0x40] sm:$0xff]
          %v1231 = vld [vmem:[#allocation2 + $0x48] sm:$0xff]
          %v1232 = vld [vmem:[#allocation2 + $0x50] sm:$0xff]
          %v1233 = vld [vmem:[#allocation2 + $0x58] sm:$0xff]
          %v1234 = vld [vmem:[#allocation2 + $0x60] sm:$0xff]
          %v1235 = vld [vmem:[#allocation2 + $0x68] sm:$0xff]
          %v1236 = vld [vmem:[#allocation2 + $0x70] sm:$0xff]
          %v1237 = vld [vmem:[#allocation2 + $0x78] sm:$0xff]
          %v1238 = vld [vmem:[#allocation2 + $0x80] sm:$0xff]
          %v1239 = vld [vmem:[#allocation2 + $0x88] sm:$0xff]
          %v1240 = vld [vmem:[#allocation2 + $0x90] sm:$0xff]
          %v1241 = vld [vmem:[#allocation2 + $0x98] sm:$0xff]
          %v1242 = vld [vmem:[#allocation2 + $0xa0] sm:$0xff]
          %v1243 = vld [vmem:[#allocation2 + $0xa8] sm:$0xff]
          %v1244 = vld [vmem:[#allocation2 + $0xb0] sm:$0xff]
          %v1245 = vld [vmem:[#allocation2 + $0xb8] sm:$0xff]
          %v1246 = vld [vmem:[#allocation2 + $0xc0] sm:$0xff]
          %v1247 = vld [vmem:[#allocation2 + $0xc8] sm:$0xff]
          %v1248 = vld [vmem:[#allocation2 + $0xd0] sm:$0xff]
          %v1249 = vld [vmem:[#allocation2 + $0xd8] sm:$0xff]
          %v1250 = vld [vmem:[#allocation2 + $0xe0] sm:$0xff]
          %v1251 = vld [vmem:[#allocation2 + $0xe8] sm:$0xff]
          %v1252 = vld [vmem:[#allocation2 + $0xf0] sm:$0xff]
          %v1253 = vld [vmem:[#allocation2 + $0xf8] sm:$0xff]
          %v1254 = vld [vmem:[%s257] sm:$0x1]
          %v1256 = vlaneseq
          %v1257 = vshrl.u32 %v1256, 7
          %v1258 = vsub.s32 0, %v1257
          %v1259 = vrot.slane %v1254, %v1258
          %v1261 = vadd.f32 %v1222, %v1259
          %v1262 = vadd.f32 %v1223, %v1259
          %v1263 = vadd.f32 %v1224, %v1259
          %v1264 = vadd.f32 %v1225, %v1259
          %v1265 = vadd.f32 %v1226, %v1259
          %v1266 = vadd.f32 %v1227, %v1259
          %v1267 = vadd.f32 %v1228, %v1259
          %v1268 = vadd.f32 %v1229, %v1259
          %v1269 = vadd.f32 %v1230, %v1259
          %v1270 = vadd.f32 %v1231, %v1259
          %v1271 = vadd.f32 %v1232, %v1259
          %v1272 = vadd.f32 %v1233, %v1259
          %v1273 = vadd.f32 %v1234, %v1259
          %v1274 = vadd.f32 %v1235, %v1259
          %v1275 = vadd.f32 %v1236, %v1259
          %v1276 = vadd.f32 %v1237, %v1259
          %v1277 = vadd.f32 %v1238, %v1259
          %v1278 = vadd.f32 %v1239, %v1259
          %v1279 = vadd.f32 %v1240, %v1259
          %v1280 = vadd.f32 %v1241, %v1259
          %v1281 = vadd.f32 %v1242, %v1259
          %v1282 = vadd.f32 %v1243, %v1259
          %v1283 = vadd.f32 %v1244, %v1259
          %v1284 = vadd.f32 %v1245, %v1259
          %v1285 = vadd.f32 %v1246, %v1259
          %v1286 = vadd.f32 %v1247, %v1259
          %v1287 = vadd.f32 %v1248, %v1259
          %v1288 = vadd.f32 %v1249, %v1259
          %v1289 = vadd.f32 %v1250, %v1259
          %v1290 = vadd.f32 %v1251, %v1259
          %v1291 = vadd.f32 %v1252, %v1259
          %v1292 = vadd.f32 %v1253, %v1259
          %v1293 = vmax.f32 %v1261, 0.0
          %v1294 = vmax.f32 %v1262, 0.0
          %v1295 = vmax.f32 %v1263, 0.0
          %v1296 = vmax.f32 %v1264, 0.0
          %v1297 = vmax.f32 %v1265, 0.0
          %v1298 = vmax.f32 %v1266, 0.0
          %v1299 = vmax.f32 %v1267, 0.0
          %v1300 = vmax.f32 %v1268, 0.0
          %v1301 = vmax.f32 %v1269, 0.0
          %v1302 = vmax.f32 %v1270, 0.0
          %v1303 = vmax.f32 %v1271, 0.0
          %v1304 = vmax.f32 %v1272, 0.0
          %v1305 = vmax.f32 %v1273, 0.0
          %v1306 = vmax.f32 %v1274, 0.0
          %v1307 = vmax.f32 %v1275, 0.0
          %v1308 = vmax.f32 %v1276, 0.0
          %v1309 = vmax.f32 %v1277, 0.0
          %v1310 = vmax.f32 %v1278, 0.0
          %v1311 = vmax.f32 %v1279, 0.0
          %v1312 = vmax.f32 %v1280, 0.0
          %v1313 = vmax.f32 %v1281, 0.0
          %v1314 = vmax.f32 %v1282, 0.0
          %v1315 = vmax.f32 %v1283, 0.0
          %v1316 = vmax.f32 %v1284, 0.0
          %v1317 = vmax.f32 %v1285, 0.0
          %v1318 = vmax.f32 %v1286, 0.0
          %v1319 = vmax.f32 %v1287, 0.0
          %v1320 = vmax.f32 %v1288, 0.0
          %v1321 = vmax.f32 %v1289, 0.0
          %v1322 = vmax.f32 %v1290, 0.0
          %v1323 = vmax.f32 %v1291, 0.0
          %v1324 = vmax.f32 %v1292, 0.0
          %v1325 = vpack.c.bf16 %v1294, %v1293
          %v1326 = vpack.c.bf16 %v1296, %v1295
          %v1327 = vpack.c.bf16 %v1298, %v1297
          %v1328 = vpack.c.bf16 %v1300, %v1299
          %v1329 = vpack.c.bf16 %v1302, %v1301
          %v1330 = vpack.c.bf16 %v1304, %v1303
          %v1331 = vpack.c.bf16 %v1306, %v1305
          %v1332 = vpack.c.bf16 %v1308, %v1307
          %v1333 = vpack.c.bf16 %v1310, %v1309
          %v1334 = vpack.c.bf16 %v1312, %v1311
          %v1335 = vpack.c.bf16 %v1314, %v1313
          %v1336 = vpack.c.bf16 %v1316, %v1315
          %v1337 = vpack.c.bf16 %v1318, %v1317
          %v1338 = vpack.c.bf16 %v1320, %v1319
          %v1339 = vpack.c.bf16 %v1322, %v1321
          %v1340 = vpack.c.bf16 %v1324, %v1323
          %v1357 = vunpack.c.l.b16 %v1325
          %v1358 = vunpack.c.h.b16 %v1325
          %v1359 = vunpack.c.l.b16 %v1326
          %v1360 = vunpack.c.h.b16 %v1326
          %v1361 = vunpack.c.l.b16 %v1327
          %v1362 = vunpack.c.h.b16 %v1327
          %v1363 = vunpack.c.l.b16 %v1328
          %v1364 = vunpack.c.h.b16 %v1328
          %v1365 = vunpack.c.l.b16 %v1329
          %v1366 = vunpack.c.h.b16 %v1329
          %v1367 = vunpack.c.l.b16 %v1330
          %v1368 = vunpack.c.h.b16 %v1330
          %v1369 = vunpack.c.l.b16 %v1331
          %v1370 = vunpack.c.h.b16 %v1331
          %v1371 = vunpack.c.l.b16 %v1332
          %v1372 = vunpack.c.h.b16 %v1332
          %v1373 = vunpack.c.l.b16 %v1333
          %v1374 = vunpack.c.h.b16 %v1333
          %v1375 = vunpack.c.l.b16 %v1334
          %v1376 = vunpack.c.h.b16 %v1334
          %v1377 = vunpack.c.l.b16 %v1335
          %v1378 = vunpack.c.h.b16 %v1335
          %v1379 = vunpack.c.l.b16 %v1336
          %v1380 = vunpack.c.h.b16 %v1336
          %v1381 = vunpack.c.l.b16 %v1337
          %v1382 = vunpack.c.h.b16 %v1337
          %v1383 = vunpack.c.l.b16 %v1338
          %v1384 = vunpack.c.h.b16 %v1338
          %v1385 = vunpack.c.l.b16 %v1339
          %v1386 = vunpack.c.h.b16 %v1339
          %v1387 = vunpack.c.l.b16 %v1340
          %v1388 = vunpack.c.h.b16 %v1340
          %v1389 = vpack.c.b16 %v1357, %v1357
          %v1390 = vpack.c.b16 %v1358, %v1358
          %v1391 = vpack.c.b16 %v1359, %v1359
          %v1392 = vpack.c.b16 %v1360, %v1360
          %v1393 = vpack.c.b16 %v1361, %v1361
          %v1394 = vpack.c.b16 %v1362, %v1362
          %v1395 = vpack.c.b16 %v1363, %v1363
          %v1396 = vpack.c.b16 %v1364, %v1364
          %v1397 = vpack.c.b16 %v1365, %v1365
          %v1398 = vpack.c.b16 %v1366, %v1366
          %v1399 = vpack.c.b16 %v1367, %v1367
          %v1400 = vpack.c.b16 %v1368, %v1368
          %v1401 = vpack.c.b16 %v1369, %v1369
          %v1402 = vpack.c.b16 %v1370, %v1370
          %v1403 = vpack.c.b16 %v1371, %v1371
          %v1404 = vpack.c.b16 %v1372, %v1372
          %v1405 = vpack.c.b16 %v1373, %v1373
          %v1406 = vpack.c.b16 %v1374, %v1374
          %v1407 = vpack.c.b16 %v1375, %v1375
          %v1408 = vpack.c.b16 %v1376, %v1376
          %v1409 = vpack.c.b16 %v1377, %v1377
          %v1410 = vpack.c.b16 %v1378, %v1378
          %v1411 = vpack.c.b16 %v1379, %v1379
          %v1412 = vpack.c.b16 %v1380, %v1380
          %v1413 = vpack.c.b16 %v1381, %v1381
          %v1414 = vpack.c.b16 %v1382, %v1382
          %v1415 = vpack.c.b16 %v1383, %v1383
          %v1416 = vpack.c.b16 %v1384, %v1384
          %v1417 = vpack.c.b16 %v1385, %v1385
          %v1418 = vpack.c.b16 %v1386, %v1386
          %v1419 = vpack.c.b16 %v1387, %v1387
          %v1420 = vpack.c.b16 %v1388, %v1388
          %1453 = vst [vmem:[%s233] sm:$0xf] %v1389
          %1454 = vst [vmem:[%s233 + $0x4] sm:$0xf] %v1390
          %1455 = vst [vmem:[%s233 + $0x8] sm:$0xf] %v1391
          %1456 = vst [vmem:[%s233 + $0xc] sm:$0xf] %v1392
          %1457 = vst [vmem:[%s233 + $0x10] sm:$0xf] %v1393
          %1458 = vst [vmem:[%s233 + $0x14] sm:$0xf] %v1394
          %1459 = vst [vmem:[%s233 + $0x18] sm:$0xf] %v1395
          %1460 = vst [vmem:[%s233 + $0x1c] sm:$0xf] %v1396
          %1461 = vst [vmem:[%s233 + $0x20] sm:$0xf] %v1397
          %1462 = vst [vmem:[%s233 + $0x24] sm:$0xf] %v1398
          %1463 = vst [vmem:[%s233 + $0x28] sm:$0xf] %v1399
          %1464 = vst [vmem:[%s233 + $0x2c] sm:$0xf] %v1400
          %1465 = vst [vmem:[%s233 + $0x30] sm:$0xf] %v1401
          %1466 = vst [vmem:[%s233 + $0x34] sm:$0xf] %v1402
          %1467 = vst [vmem:[%s233 + $0x38] sm:$0xf] %v1403
          %1468 = vst [vmem:[%s233 + $0x3c] sm:$0xf] %v1404
          %1469 = vst [vmem:[%s233 + $0x40] sm:$0xf] %v1405
          %1470 = vst [vmem:[%s233 + $0x44] sm:$0xf] %v1406
          %1471 = vst [vmem:[%s233 + $0x48] sm:$0xf] %v1407
          %1472 = vst [vmem:[%s233 + $0x4c] sm:$0xf] %v1408
          %1473 = vst [vmem:[%s233 + $0x50] sm:$0xf] %v1409
          %1474 = vst [vmem:[%s233 + $0x54] sm:$0xf] %v1410
          %1475 = vst [vmem:[%s233 + $0x58] sm:$0xf] %v1411
          %1476 = vst [vmem:[%s233 + $0x5c] sm:$0xf] %v1412
          %1477 = vst [vmem:[%s233 + $0x60] sm:$0xf] %v1413
          %1478 = vst [vmem:[%s233 + $0x64] sm:$0xf] %v1414
          %1479 = vst [vmem:[%s233 + $0x68] sm:$0xf] %v1415
          %1480 = vst [vmem:[%s233 + $0x6c] sm:$0xf] %v1416
          %1481 = vst [vmem:[%s233 + $0x70] sm:$0xf] %v1417
          %1482 = vst [vmem:[%s233 + $0x74] sm:$0xf] %v1418
          %1483 = vst [vmem:[%s233 + $0x78] sm:$0xf] %v1419
          %1484 = vst [vmem:[%s233 + $0x7c] sm:$0xf] %v1420
        $region40: #{tpu_custom_call.1} parent=31 // pred_fallthru
          _
        %s1485 = sand.u32 %s128, 1
        %s1486 = scalar_lea.sflag [#allocation4], %s1485
        %s1487 = sand.u32 %s128, 1
        %s1488 = smul.addr %s1487, 128
        %s1489 = scalar_lea.vmem [#allocation3], %s1488
        // Predicated region
        $region41: #{tpu_custom_call.1} parent=31 // pred_check
          %p1490 = pneg %p138
        $region42: #{tpu_custom_call.1} parent=31 // pred_check_branch
          %1492 = sbr.rel (%p1490) target = $region44
        $region43: #{tpu_custom_call.1} parent=31 // pred_region
          %s1493 = smul.u32 32, %s22
          %s1495 = ssub.s32 2048, 2048
          %1496 = vsyncadd %s1486, %s1495
          %s1497 = sadd.s32 %s23, %s1493
          %s1498 = smul.addr %s1497, 64
          %s1499 = scalar_lea.hbm %s3, %s1498
          %s1500 = sshll.u32 %s1489, 4
          %s1501 = int_to_ptr.vmem [resolvable:$true] %s1500
          %1506 = dma.vmem_to_hbm [thread:$0]  %s1501, 2048, %s1499, %s1486, 64, 64, 4
        $region44: #{tpu_custom_call.1} parent=31 // pred_fallthru
          _
      $region32: #{tpu_custom_call.1} parent=5 // pred_fallthru
        _
      %p1507 = scmp.le.s32.totalorder 2, %s12
      // Predicated region
      $region45: #{tpu_custom_call.1} parent=5 // pred_check
        %p1508 = pneg %p1507
      $region46: #{tpu_custom_call.1} parent=5 // pred_check_branch
        %1510 = sbr.rel (%p1508) target = $region48
      $region47: #{tpu_custom_call.1} parent=5 // pred_region
        %s1511 = ssub.s32 %s12, 2
        // Predicated region
        $region49: #{tpu_custom_call.1} parent=47 // pred_check
          %p1512 = pneg %p144
        $region50: #{tpu_custom_call.1} parent=47 // pred_check_branch
          %1514 = sbr.rel (%p1512) target = $region52
        $region51: #{tpu_custom_call.1} parent=47 // pred_region
          %s1515 = sand.u32 %s129, 1
          %s1516 = scalar_lea.sflag [#allocation4], %s1515
          %s1517 = sand.u32 %s129, 1
          %s1518 = smul.addr %s1517, 128
          %s1519 = scalar_lea.vmem [#allocation3], %s1518
          %1520 = dma.done %s1516, 2048
        $region52: #{tpu_custom_call.1} parent=47 // pred_fallthru
          _
      $region48: #{tpu_custom_call.1} parent=5 // pred_fallthru
        _
    $region6: #{tpu_custom_call.1} parent=1 // loop_footer
      %s16 = sadd.s32 1, %s12
    $region7: #{tpu_custom_call.1} parent=1 // loop_footer_branch
      %11 = sbr.rel target = $region3
    $region8: #{tpu_custom_call.1} parent=1 // loop_exit
      _
    %1521 = vsyncpa [#allocation4], 1
    %s1522 = scalar_lea.sflag [#allocation4], 1
    %1523 = vsyncpa %s1522, 1

</llo_original>
